<compile_context>
chip_gen: v6e
topology: v6e:2x2x1
jax: 0.10.0
libtpu: 0.0.40
codegen_flags: <defaults>
</compile_context>

<pallas_src>
import functools

import jax
import jax.numpy as jnp
from jax.experimental import pallas as pl
from jax.experimental.pallas import tpu as pltpu

EPS_REVIN = 1e-5
EPS_BN = 1e-5
_LANE = 128


def _round_up(n, m):
    return ((n + m - 1) // m) * m


def _vmem_limit_bytes():
    """Generation-aware scoped-VMEM limit (v5e/v6e: 128 MiB physical, v7x: 64 MiB)."""
    try:
        cap = int(pltpu.get_tpu_info().vmem_capacity_bytes)
    except Exception:
        cap = 64 * 1024 * 1024          # conservative fallback (v7x per-core size)
    return min(cap * 3 // 4, 100 * 1024 * 1024)


def _pick_tile_b(batch, seq_len, pred_len, vmem_bytes):
    """Batch rows per grid step.

    Largest tile that (a) does not pad the batch beyond the next multiple of 8 and
    (b) keeps the per-step VMEM working set (double-buffered in/out tiles plus ~10 live
    lane-padded f32 intermediates of shape [tile, L, 128]) well inside the scoped budget.
    Bigger tiles amortize the ~0.35 us fixed per-grid-step cost and give the flattened
    MLP matmul more M rows (fills v6e/v7x 256-wide MXUs / v5e's four 128x128 MXUs).
    """
    tile = _round_up(batch, 8)

    def working_set(t):
        body = 10 * t * seq_len * _LANE * 4                      # live f32 intermediates
        io = 2 * t * seq_len * _LANE * 4 + 2 * t * pred_len * _LANE * 4  # dbl-buffered tiles
        return body + io

    while tile > 8 and working_set(tile) > vmem_bytes // 3:
        tile = max(8, _round_up(tile // 2, 8))
    return tile


def _revin_norm(x):
    """Shared RevIN 'norm' math (subtract_last=True, affine=False)."""
    L = x.shape[1]
    last = x[:, L - 1:L, :]                              # [TB, 1, C]
    mean_t = jnp.mean(x, axis=1, keepdims=True)
    xc = x - mean_t
    var_t = jnp.mean(xc * xc, axis=1, keepdims=True)     # biased variance over time
    inv_std = jax.lax.rsqrt(var_t + EPS_REVIN)           # EUP rsqrt; multiply, don't divide
    z = (x - last) * inv_std
    return z, inv_std, var_t, last


def bn_stats_kernel(x_ref, sz_ref, szz_ref):
    """Pass 1: accumulate sum(z) and sum(z^2) over the batch axis per (time, series).

    Grid is (chunk, batch-tile): the leading 'parallel' chunk axis lets the reduction be
    split across TensorCores; each chunk owns its own [1, L, C] partial-sum block.
    """
    i = pl.program_id(1)
    z, _, _, _ = _revin_norm(x_ref[...])                 # [TB, L, C]

    @pl.when(i == 0)
    def _init():
        sz_ref[...] = jnp.zeros_like(sz_ref)
        szz_ref[...] = jnp.zeros_like(szz_ref)

    sz_ref[...] += jnp.sum(z, axis=0, keepdims=True)
    szz_ref[...] += jnp.sum(z * z, axis=0, keepdims=True)


def ts_mixer_kernel(x_ref, bnss_ref, w1_ref, b1_ref, w2_ref, b2_ref,
                    wpt_ref, bp_ref, out_ref):
    """Pass 2: RevIN norm -> BN (global stats) -> feature MLP -> temp_proj -> RevIN denorm."""
    x = x_ref[...]                                       # [TB, L, C] f32
    TB, L, C = x.shape
    P = wpt_ref.shape[1]

    z, inv_std, var_t, last = _revin_norm(x)             # x dead after this point
    stdev = (var_t + EPS_REVIN) * inv_std                # == sqrt(var+eps), no sqrt/div

    # BatchNorm1d(seq_len), training-mode statistics from pass 1, pre-folded into
    # a per-time-step scale/shift (one fused multiply-add).
    z_bn = z * bnss_ref[0] + bnss_ref[1]                 # [TB, L, C]

    # Feature MLP (Mlp_feat): one flattened [TB*L, C] x [C, C] matmul per layer,
    # f32 accumulation.  (Cast operands to bf16 here only when num_series is large.)
    z2d = z_bn.reshape(TB * L, C)
    h = jnp.dot(z2d, w1_ref[...], preferred_element_type=jnp.float32) + b1_ref[...]
    h = jnp.maximum(h, 0.0)
    y = jnp.dot(h, w2_ref[...], preferred_element_type=jnp.float32) + b2_ref[...]
    z2 = y.reshape(TB, L, C) + z                         # residual with pre-BN z

    # temp_proj over time: broadcast the single [P, L] weight in-register (no HBM
    # duplication) and do a batched matmul that lands directly in [TB, P, C].
    wpt = jnp.broadcast_to(wpt_ref[...], (TB, P, L))
    o = jnp.einsum("bpl,blc->bpc", wpt, z2,
                   preferred_element_type=jnp.float32) + bp_ref[...]

    # RevIN denorm; store at true C (minimal HBM writeback).
    out_ref[...] = (o * stdev + last).astype(out_ref.dtype)


@functools.partial(jax.jit, static_argnames=("pred_len",))
def ts_mixer_forward(x, w1, b1, w2, b2, wp, bp, *, pred_len):
    B, L, C = x.shape
    P = pred_len
    f32 = jnp.float32

    vmem = _vmem_limit_bytes()
    tile_b = _pick_tile_b(B, L, P, vmem)
    Bp = _round_up(B, tile_b)
    nb = Bp // tile_b
    # Split the stats reduction across two cores when there are enough batch tiles.
    n_chunks = 2 if (nb >= 2 and nb % 2 == 0) else 1
    nb_c = nb // n_chunks

    # Only the batch axis is padded; padded rows are all-zero => z == 0 => they add exact
    # zeros to the BN sums and are sliced off the output.
    x_f = x.astype(f32)
    x_p = x_f if Bp == B else jnp.zeros((Bp, L, C), f32).at[:B].set(x_f)

    # ---- Pass 1: global BatchNorm batch statistics (parallel chunks x batch reduction). ----
    sum_z, sum_zz = pl.pallas_call(
        bn_stats_kernel,
        out_shape=(jax.ShapeDtypeStruct((n_chunks, L, C), f32),
                   jax.ShapeDtypeStruct((n_chunks, L, C), f32)),
        grid_spec=pltpu.PrefetchScalarGridSpec(
            num_scalar_prefetch=0,
            grid=(n_chunks, nb_c),
            in_specs=[pl.BlockSpec((tile_b, L, C),
                                   lambda j, i: (j * nb_c + i, 0, 0))],
            out_specs=[pl.BlockSpec((1, L, C), lambda j, i: (j, 0, 0)),
                       pl.BlockSpec((1, L, C), lambda j, i: (j, 0, 0))]),
        compiler_params=pltpu.CompilerParams(
            dimension_semantics=("parallel", "arbitrary"),
            vmem_limit_bytes=vmem),
    )(x_p)

    # Fold the stats into a packed per-time-step scale/shift: z_bn = z*scale + shift.
    denom = jnp.float32(B * C)                           # padded batch rows add exact zeros
    bn_mean = jnp.sum(sum_z, axis=(0, 2)) / denom        # [L]
    bn_ms = jnp.sum(sum_zz, axis=(0, 2)) / denom
    bn_scale = jax.lax.rsqrt(bn_ms - bn_mean * bn_mean + EPS_BN)
    bn_shift = -bn_mean * bn_scale
    bn_ss = jnp.stack([jnp.broadcast_to(bn_scale[:, None], (L, C)),
                       jnp.broadcast_to(bn_shift[:, None], (L, C))])   # [2, L, C]

    w1_r = w1.astype(f32)
    b1_r = b1.astype(f32)[None, :]                       # [1, C]
    w2_r = w2.astype(f32)
    b2_r = b2.astype(f32)[None, :]
    wpt_r = wp.astype(f32).T[None, :, :]                 # [1, P, L] (single copy)
    bp_r = jnp.broadcast_to(bp.astype(f32)[None, :, None], (1, P, C))

    # ---- Pass 2: batch-tiled, fully parallel main kernel (megacore-shardable). ----
    out_p = pl.pallas_call(
        ts_mixer_kernel,
        out_shape=jax.ShapeDtypeStruct((Bp, P, C), f32),
        grid_spec=pltpu.PrefetchScalarGridSpec(
            num_scalar_prefetch=0,
            grid=(nb,),
            in_specs=[
                pl.BlockSpec((tile_b, L, C), lambda i: (i, 0, 0)),   # x tile
                pl.BlockSpec((2, L, C), lambda i: (0, 0, 0)),        # BN scale/shift (packed)
                pl.BlockSpec((C, C), lambda i: (0, 0)),              # w1
                pl.BlockSpec((1, C), lambda i: (0, 0)),              # b1
                pl.BlockSpec((C, C), lambda i: (0, 0)),              # w2
                pl.BlockSpec((1, C), lambda i: (0, 0)),              # b2
                pl.BlockSpec((1, P, L), lambda i: (0, 0, 0)),        # wp^T (single copy)
                pl.BlockSpec((1, P, C), lambda i: (0, 0, 0)),        # bp
            ],
            out_specs=pl.BlockSpec((tile_b, P, C), lambda i: (i, 0, 0))),
        compiler_params=pltpu.CompilerParams(
            dimension_semantics=("parallel",), vmem_limit_bytes=vmem),
    )(x_p, bn_ss, w1_r, b1_r, w2_r, b2_r, wpt_r, bp_r)

    return out_p if Bp == B else out_p[:B]


def ts_mixer_reference(x, w1, b1, w2, b2, wp, bp):
    """Pure-JAX (f32) reference of the same forward pass."""
    last = x[:, -1:, :]
    stdev = jnp.sqrt(jnp.var(x, axis=1, keepdims=True) + EPS_REVIN)
    z = (x - last) / stdev
    bn_mean = jnp.mean(z, axis=(0, 2), keepdims=True)
    bn_var = jnp.var(z, axis=(0, 2), keepdims=True)
    z_bn = (z - bn_mean) / jnp.sqrt(bn_var + EPS_BN)
    h = jnp.maximum(z_bn @ w1 + b1, 0.0)
    y = h @ w2 + b2
    z2 = y + z
    o = jnp.einsum("blc,lp->bpc", z2, wp) + bp[None, :, None]
    return o * stdev + last


def init_params(key, seq_len, pred_len, num_series):
    """PyTorch-Linear-style init; weights stored pre-transposed as [in, out]."""
    k1, k2, k3, k4, k5, k6 = jax.random.split(key, 6)
    sf = 1.0 / jnp.sqrt(jnp.float32(num_series))
    st = 1.0 / jnp.sqrt(jnp.float32(seq_len))
    w1 = jax.random.uniform(k1, (num_series, num_series), jnp.float32, -sf, sf)
    b1 = jax.random.uniform(k2, (num_series,), jnp.float32, -sf, sf)
    w2 = jax.random.uniform(k3, (num_series, num_series), jnp.float32, -sf, sf)
    b2 = jax.random.uniform(k4, (num_series,), jnp.float32, -sf, sf)
    wp = jax.random.uniform(k5, (seq_len, pred_len), jnp.float32, -st, st)
    bp = jax.random.uniform(k6, (pred_len,), jnp.float32, -st, st)
    return w1, b1, w2, b2, wp, bp


if __name__ == "__main__":
    # configs: past_history (seq_len) = 16, forecast_horizon (pred_len) = 8, num_series = 4
    B, L, P, C = 2, 16, 8, 4

    key = jax.random.PRNGKey(0)
    kx, kp = jax.random.split(key)
    x = jax.random.normal(kx, (B, L, C), dtype=jnp.float32)
    w1, b1, w2, b2, wp, bp = init_params(kp, L, P, C)

    out = ts_mixer_forward(x, w1, b1, w2, b2, wp, bp, pred_len=P)
    out = jax.block_until_ready(out)

    ref = ts_mixer_reference(x, w1, b1, w2, b2, wp, bp)
    assert out.shape == (B, P, C), out.shape
    # All-f32 kernel; tolerance covers possible reduced-precision MXU passes for f32 dots.
    assert jnp.allclose(out, ref, rtol=2e-2, atol=2e-2), "mismatch vs pure-JAX reference"

    print("KERNEL_OK")
</pallas_src>

<mosaic_0001>
module attributes {stable_mosaic.version = 11 : i64} {
  func.func @bn_stats_kernel(%arg0: i32, %arg1: i32, %arg2: memref<8x16x4xf32, #tpu.memory_space<vmem>>, %arg3: memref<1x16x4xf32, #tpu.memory_space<vmem>>, %arg4: memref<1x16x4xf32, #tpu.memory_space<vmem>>) attributes {dimension_semantics = [#tpu.dimension_semantics<parallel>, #tpu.dimension_semantics<arbitrary>], iteration_bounds = array<i64: 1, 1>, scalar_prefetch = 0 : i64, scratch_operands = 0 : i64, tpu.core_type = #tpu.core_type<tc>, window_params = [{transform_indices = @transform_0, window_bounds = array<i64: 8, 16, 4>}, {transform_indices = @transform_1, window_bounds = array<i64: 1, 16, 4>}, {transform_indices = @transform_2, window_bounds = array<i64: 1, 16, 4>}]} {
    %c0 = arith.constant 0 : index
    %c0_0 = arith.constant 0 : index
    %c0_1 = arith.constant 0 : index
    %0 = vector.load %arg2[%c0, %c0_0, %c0_1] : memref<8x16x4xf32, #tpu.memory_space<vmem>>, vector<8x16x4xf32>
    %1 = vector.extract_strided_slice %0 {offsets = [0, 15, 0], sizes = [8, 1, 4], strides = [1, 1, 1]} : vector<8x16x4xf32> to vector<8x1x4xf32>
    %cst = arith.constant dense<0.000000e+00> : vector<8x4xf32>
    %2 = vector.multi_reduction <add>, %0, %cst [1] : vector<8x16x4xf32> to vector<8x4xf32>
    %3 = vector.shape_cast %2 : vector<8x4xf32> to vector<8x1x4xf32>
    %cst_2 = arith.constant 1.600000e+01 : f32
    %4 = vector.broadcast %cst_2 : f32 to vector<8x1x4xf32>
    %5 = arith.divf %3, %4 : vector<8x1x4xf32>
    %6 = vector.broadcast %5 : vector<8x1x4xf32> to vector<8x16x4xf32>
    %7 = arith.subf %0, %6 : vector<8x16x4xf32>
    %8 = arith.mulf %7, %7 : vector<8x16x4xf32>
    %cst_3 = arith.constant dense<0.000000e+00> : vector<8x4xf32>
    %9 = vector.multi_reduction <add>, %8, %cst_3 [1] : vector<8x16x4xf32> to vector<8x4xf32>
    %10 = vector.shape_cast %9 : vector<8x4xf32> to vector<8x1x4xf32>
    %cst_4 = arith.constant 1.600000e+01 : f32
    %11 = vector.broadcast %cst_4 : f32 to vector<8x1x4xf32>
    %12 = arith.divf %10, %11 : vector<8x1x4xf32>
    %cst_5 = arith.constant 9.99999974E-6 : f32
    %13 = vector.broadcast %cst_5 : f32 to vector<8x1x4xf32>
    %14 = arith.addf %12, %13 : vector<8x1x4xf32>
    %15 = math.rsqrt %14 : vector<8x1x4xf32>
    %16 = vector.broadcast %1 : vector<8x1x4xf32> to vector<8x16x4xf32>
    %17 = arith.subf %0, %16 : vector<8x16x4xf32>
    %18 = vector.broadcast %15 : vector<8x1x4xf32> to vector<8x16x4xf32>
    %19 = arith.mulf %17, %18 : vector<8x16x4xf32>
    %c0_i32 = arith.constant 0 : i32
    %20 = arith.cmpi eq, %arg1, %c0_i32 : i32
    %21 = arith.extui %20 : i1 to i32
    %c0_i32_6 = arith.constant 0 : i32
    %22 = arith.cmpi ne, %21, %c0_i32_6 : i32
    scf.if %22 {
      %cst_21 = arith.constant 0.000000e+00 : f32
      %34 = vector.broadcast %cst_21 : f32 to vector<1x16x4xf32>
      %c0_22 = arith.constant 0 : index
      %c0_23 = arith.constant 0 : index
      %c0_24 = arith.constant 0 : index
      %35 = vector.load %arg3[%c0_22, %c0_23, %c0_24] : memref<1x16x4xf32, #tpu.memory_space<vmem>>, vector<1x16x4xf32>
      tpu.vector_store %arg3[%c0_22, %c0_23, %c0_24], %34 {strides = array<i32>} : memref<1x16x4xf32, #tpu.memory_space<vmem>>, vector<1x16x4xf32>,
      %cst_25 = arith.constant 0.000000e+00 : f32
      %36 = vector.broadcast %cst_25 : f32 to vector<1x16x4xf32>
      %c0_26 = arith.constant 0 : index
      %c0_27 = arith.constant 0 : index
      %c0_28 = arith.constant 0 : index
      %37 = vector.load %arg4[%c0_26, %c0_27, %c0_28] : memref<1x16x4xf32, #tpu.memory_space<vmem>>, vector<1x16x4xf32>
      tpu.vector_store %arg4[%c0_26, %c0_27, %c0_28], %36 {strides = array<i32>} : memref<1x16x4xf32, #tpu.memory_space<vmem>>, vector<1x16x4xf32>,
    } else {
    }
    %c0_7 = arith.constant 0 : index
    %c0_8 = arith.constant 0 : index
    %c0_9 = arith.constant 0 : index
    %23 = vector.load %arg3[%c0_7, %c0_8, %c0_9] : memref<1x16x4xf32, #tpu.memory_space<vmem>>, vector<1x16x4xf32>
    %cst_10 = arith.constant dense<0.000000e+00> : vector<16x4xf32>
    %24 = vector.multi_reduction <add>, %19, %cst_10 [0] : vector<8x16x4xf32> to vector<16x4xf32>
    %25 = vector.shape_cast %24 : vector<16x4xf32> to vector<1x16x4xf32>
    %26 = arith.addf %23, %25 : vector<1x16x4xf32>
    %c0_11 = arith.constant 0 : index
    %c0_12 = arith.constant 0 : index
    %c0_13 = arith.constant 0 : index
    %27 = vector.load %arg3[%c0_11, %c0_12, %c0_13] : memref<1x16x4xf32, #tpu.memory_space<vmem>>, vector<1x16x4xf32>
    tpu.vector_store %arg3[%c0_11, %c0_12, %c0_13], %26 {strides = array<i32>} : memref<1x16x4xf32, #tpu.memory_space<vmem>>, vector<1x16x4xf32>,
    %c0_14 = arith.constant 0 : index
    %c0_15 = arith.constant 0 : index
    %c0_16 = arith.constant 0 : index
    %28 = vector.load %arg4[%c0_14, %c0_15, %c0_16] : memref<1x16x4xf32, #tpu.memory_space<vmem>>, vector<1x16x4xf32>
    %29 = arith.mulf %19, %19 : vector<8x16x4xf32>
    %cst_17 = arith.constant dense<0.000000e+00> : vector<16x4xf32>
    %30 = vector.multi_reduction <add>, %29, %cst_17 [0] : vector<8x16x4xf32> to vector<16x4xf32>
    %31 = vector.shape_cast %30 : vector<16x4xf32> to vector<1x16x4xf32>
    %32 = arith.addf %28, %31 : vector<1x16x4xf32>
    %c0_18 = arith.constant 0 : index
    %c0_19 = arith.constant 0 : index
    %c0_20 = arith.constant 0 : index
    %33 = vector.load %arg4[%c0_18, %c0_19, %c0_20] : memref<1x16x4xf32, #tpu.memory_space<vmem>>, vector<1x16x4xf32>
    tpu.vector_store %arg4[%c0_18, %c0_19, %c0_20], %32 {strides = array<i32>} : memref<1x16x4xf32, #tpu.memory_space<vmem>>, vector<1x16x4xf32>,
    return
  }
  func.func @transform_0(%arg0: i32, %arg1: i32) -> (i32, i32, i32) {
    %c1_i32 = arith.constant 1 : i32
    %0 = arith.muli %arg0, %c1_i32 : i32
    %1 = arith.addi %0, %arg1 : i32
    %c0_i32 = arith.constant 0 : i32
    %c0_i32_0 = arith.constant 0 : i32
    %c0_i32_1 = arith.constant 0 : i32
    return %1, %c0_i32, %c0_i32_0 : i32, i32, i32
  }
  func.func @transform_1(%arg0: i32, %arg1: i32) -> (i32, i32, i32) {
    %c0_i32 = arith.constant 0 : i32
    %c0_i32_0 = arith.constant 0 : i32
    %c0_i32_1 = arith.constant 0 : i32
    return %arg0, %c0_i32, %c0_i32_0 : i32, i32, i32
  }
  func.func @transform_2(%arg0: i32, %arg1: i32) -> (i32, i32, i32) {
    %c0_i32 = arith.constant 0 : i32
    %c0_i32_0 = arith.constant 0 : i32
    %c0_i32_1 = arith.constant 0 : i32
    return %arg0, %c0_i32, %c0_i32_0 : i32, i32, i32
  }
}

module attributes {stable_mosaic.version = 11 : i64} {
  func.func @ts_mixer_kernel(%arg0: i32, %arg1: memref<8x16x4xf32, #tpu.memory_space<vmem>>, %arg2: memref<2x16x4xf32, #tpu.memory_space<vmem>>, %arg3: memref<4x4xf32, #tpu.memory_space<vmem>>, %arg4: memref<1x4xf32, #tpu.memory_space<vmem>>, %arg5: memref<4x4xf32, #tpu.memory_space<vmem>>, %arg6: memref<1x4xf32, #tpu.memory_space<vmem>>, %arg7: memref<1x8x16xf32, #tpu.memory_space<vmem>>, %arg8: memref<1x8x4xf32, #tpu.memory_space<vmem>>, %arg9: memref<8x8x4xf32, #tpu.memory_space<vmem>>) attributes {dimension_semantics = [#tpu.dimension_semantics<parallel>], iteration_bounds = array<i64: 1>, scalar_prefetch = 0 : i64, scratch_operands = 0 : i64, tpu.core_type = #tpu.core_type<tc>, window_params = [{transform_indices = @transform_0, window_bounds = array<i64: 8, 16, 4>}, {pipeline_mode = #tpu.pipeline_mode<synchronous>, transform_indices = @transform_1, window_bounds = array<i64: 2, 16, 4>}, {pipeline_mode = #tpu.pipeline_mode<synchronous>, transform_indices = @transform_2, window_bounds = array<i64: 4, 4>}, {pipeline_mode = #tpu.pipeline_mode<synchronous>, transform_indices = @transform_3, window_bounds = array<i64: 1, 4>}, {pipeline_mode = #tpu.pipeline_mode<synchronous>, transform_indices = @transform_4, window_bounds = array<i64: 4, 4>}, {pipeline_mode = #tpu.pipeline_mode<synchronous>, transform_indices = @transform_5, window_bounds = array<i64: 1, 4>}, {pipeline_mode = #tpu.pipeline_mode<synchronous>, transform_indices = @transform_6, window_bounds = array<i64: 1, 8, 16>}, {pipeline_mode = #tpu.pipeline_mode<synchronous>, transform_indices = @transform_7, window_bounds = array<i64: 1, 8, 4>}, {transform_indices = @transform_8, window_bounds = array<i64: 8, 8, 4>}]} {
    %c0 = arith.constant 0 : index
    %c0_0 = arith.constant 0 : index
    %c0_1 = arith.constant 0 : index
    %0 = vector.load %arg1[%c0, %c0_0, %c0_1] : memref<8x16x4xf32, #tpu.memory_space<vmem>>, vector<8x16x4xf32>
    %1 = vector.extract_strided_slice %0 {offsets = [0, 15, 0], sizes = [8, 1, 4], strides = [1, 1, 1]} : vector<8x16x4xf32> to vector<8x1x4xf32>
    %cst = arith.constant dense<0.000000e+00> : vector<8x4xf32>
    %2 = vector.multi_reduction <add>, %0, %cst [1] : vector<8x16x4xf32> to vector<8x4xf32>
    %3 = vector.shape_cast %2 : vector<8x4xf32> to vector<8x1x4xf32>
    %cst_2 = arith.constant 1.600000e+01 : f32
    %4 = vector.broadcast %cst_2 : f32 to vector<8x1x4xf32>
    %5 = arith.divf %3, %4 : vector<8x1x4xf32>
    %6 = vector.broadcast %5 : vector<8x1x4xf32> to vector<8x16x4xf32>
    %7 = arith.subf %0, %6 : vector<8x16x4xf32>
    %8 = arith.mulf %7, %7 : vector<8x16x4xf32>
    %cst_3 = arith.constant dense<0.000000e+00> : vector<8x4xf32>
    %9 = vector.multi_reduction <add>, %8, %cst_3 [1] : vector<8x16x4xf32> to vector<8x4xf32>
    %10 = vector.shape_cast %9 : vector<8x4xf32> to vector<8x1x4xf32>
    %cst_4 = arith.constant 1.600000e+01 : f32
    %11 = vector.broadcast %cst_4 : f32 to vector<8x1x4xf32>
    %12 = arith.divf %10, %11 : vector<8x1x4xf32>
    %cst_5 = arith.constant 9.99999974E-6 : f32
    %13 = vector.broadcast %cst_5 : f32 to vector<8x1x4xf32>
    %14 = arith.addf %12, %13 : vector<8x1x4xf32>
    %15 = math.rsqrt %14 : vector<8x1x4xf32>
    %16 = vector.broadcast %1 : vector<8x1x4xf32> to vector<8x16x4xf32>
    %17 = arith.subf %0, %16 : vector<8x16x4xf32>
    %18 = vector.broadcast %15 : vector<8x1x4xf32> to vector<8x16x4xf32>
    %19 = arith.mulf %17, %18 : vector<8x16x4xf32>
    %cst_6 = arith.constant 9.99999974E-6 : f32
    %20 = vector.broadcast %cst_6 : f32 to vector<8x1x4xf32>
    %21 = arith.addf %12, %20 : vector<8x1x4xf32>
    %22 = arith.mulf %21, %15 : vector<8x1x4xf32>
    %c0_7 = arith.constant 0 : index
    %c0_8 = arith.constant 0 : index
    %c0_9 = arith.constant 0 : index
    %23 = vector.load %arg2[%c0_7, %c0_8, %c0_9] : memref<2x16x4xf32, #tpu.memory_space<vmem>>, vector<1x16x4xf32>
    %24 = vector.shape_cast %23 : vector<1x16x4xf32> to vector<16x4xf32>
    %25 = vector.shape_cast %24 : vector<16x4xf32> to vector<1x16x4xf32>
    %26 = vector.broadcast %25 : vector<1x16x4xf32> to vector<8x16x4xf32>
    %27 = arith.mulf %19, %26 : vector<8x16x4xf32>
    %c1 = arith.constant 1 : index
    %c0_10 = arith.constant 0 : index
    %c0_11 = arith.constant 0 : index
    %28 = vector.load %arg2[%c1, %c0_10, %c0_11] : memref<2x16x4xf32, #tpu.memory_space<vmem>>, vector<1x16x4xf32>
    %29 = vector.shape_cast %28 : vector<1x16x4xf32> to vector<16x4xf32>
    %30 = vector.shape_cast %29 : vector<16x4xf32> to vector<1x16x4xf32>
    %31 = vector.broadcast %30 : vector<1x16x4xf32> to vector<8x16x4xf32>
    %32 = arith.addf %27, %31 : vector<8x16x4xf32>
    %33 = vector.shape_cast %32 : vector<8x16x4xf32> to vector<128x4xf32>
    %c0_12 = arith.constant 0 : index
    %c0_13 = arith.constant 0 : index
    %34 = vector.load %arg3[%c0_12, %c0_13] : memref<4x4xf32, #tpu.memory_space<vmem>>, vector<4x4xf32>
    %cst_14 = arith.constant dense<0.000000e+00> : vector<128x4xf32>
    %35 = tpu.matmul %33, %34, %cst_14 {dimension_numbers = #tpu.dot_dimension_numbers<[1], [0], [0], [1], [0, 0, 1, 1], [], []>} : vector<128x4xf32>, vector<4x4xf32>, vector<128x4xf32> -> vector<128x4xf32>
    %c0_15 = arith.constant 0 : index
    %c0_16 = arith.constant 0 : index
    %36 = vector.load %arg4[%c0_15, %c0_16] : memref<1x4xf32, #tpu.memory_space<vmem>>, vector<1x4xf32>
    %37 = vector.broadcast %36 : vector<1x4xf32> to vector<128x4xf32>
    %38 = arith.addf %35, %37 : vector<128x4xf32>
    %cst_17 = arith.constant 0.000000e+00 : f32
    %39 = vector.broadcast %cst_17 : f32 to vector<128x4xf32>
    %40 = arith.maximumf %38, %39 : vector<128x4xf32>
    %c0_18 = arith.constant 0 : index
    %c0_19 = arith.constant 0 : index
    %41 = vector.load %arg5[%c0_18, %c0_19] : memref<4x4xf32, #tpu.memory_space<vmem>>, vector<4x4xf32>
    %cst_20 = arith.constant dense<0.000000e+00> : vector<128x4xf32>
    %42 = tpu.matmul %40, %41, %cst_20 {dimension_numbers = #tpu.dot_dimension_numbers<[1], [0], [0], [1], [0, 0, 1, 1], [], []>} : vector<128x4xf32>, vector<4x4xf32>, vector<128x4xf32> -> vector<128x4xf32>
    %c0_21 = arith.constant 0 : index
    %c0_22 = arith.constant 0 : index
    %43 = vector.load %arg6[%c0_21, %c0_22] : memref<1x4xf32, #tpu.memory_space<vmem>>, vector<1x4xf32>
    %44 = vector.broadcast %43 : vector<1x4xf32> to vector<128x4xf32>
    %45 = arith.addf %42, %44 : vector<128x4xf32>
    %46 = vector.shape_cast %45 : vector<128x4xf32> to vector<8x16x4xf32>
    %47 = arith.addf %46, %19 : vector<8x16x4xf32>
    %c0_23 = arith.constant 0 : index
    %c0_24 = arith.constant 0 : index
    %c0_25 = arith.constant 0 : index
    %48 = vector.load %arg7[%c0_23, %c0_24, %c0_25] : memref<1x8x16xf32, #tpu.memory_space<vmem>>, vector<1x8x16xf32>
    %49 = vector.shape_cast %48 : vector<1x8x16xf32> to vector<1x8x16xf32>
    %50 = vector.broadcast %49 : vector<1x8x16xf32> to vector<8x8x16xf32>
    "tpu.trace_start"() <{level = 10 : i32, message = "bpl,blc->bpc"}> : () -> ()
    %cst_26 = arith.constant dense<0.000000e+00> : vector<8x8x4xf32>
    %51 = tpu.matmul %50, %47, %cst_26 {dimension_numbers = #tpu.dot_dimension_numbers<[2], [1], [1], [2], [0, 0, 0, 1, 1, 2], [0], [0]>} : vector<8x8x16xf32>, vector<8x16x4xf32>, vector<8x8x4xf32> -> vector<8x8x4xf32>
    "tpu.trace_stop"() : () -> ()
    %c0_27 = arith.constant 0 : index
    %c0_28 = arith.constant 0 : index
    %c0_29 = arith.constant 0 : index
    %52 = vector.load %arg8[%c0_27, %c0_28, %c0_29] : memref<1x8x4xf32, #tpu.memory_space<vmem>>, vector<1x8x4xf32>
    %53 = vector.broadcast %52 : vector<1x8x4xf32> to vector<8x8x4xf32>
    %54 = arith.addf %51, %53 : vector<8x8x4xf32>
    %55 = vector.broadcast %22 : vector<8x1x4xf32> to vector<8x8x4xf32>
    %56 = arith.mulf %54, %55 : vector<8x8x4xf32>
    %57 = vector.broadcast %1 : vector<8x1x4xf32> to vector<8x8x4xf32>
    %58 = arith.addf %56, %57 : vector<8x8x4xf32>
    %c0_30 = arith.constant 0 : index
    %c0_31 = arith.constant 0 : index
    %c0_32 = arith.constant 0 : index
    %59 = vector.load %arg9[%c0_30, %c0_31, %c0_32] : memref<8x8x4xf32, #tpu.memory_space<vmem>>, vector<8x8x4xf32>
    tpu.vector_store %arg9[%c0_30, %c0_31, %c0_32], %58 {strides = array<i32>} : memref<8x8x4xf32, #tpu.memory_space<vmem>>, vector<8x8x4xf32>,
    return
  }
  func.func @transform_0(%arg0: i32) -> (i32, i32, i32) {
    %c0_i32 = arith.constant 0 : i32
    %c0_i32_0 = arith.constant 0 : i32
    %c0_i32_1 = arith.constant 0 : i32
    return %arg0, %c0_i32, %c0_i32_0 : i32, i32, i32
  }
  func.func @transform_1(%arg0: i32) -> (i32, i32, i32) {
    %c0_i32 = arith.constant 0 : i32
    %c0_i32_0 = arith.constant 0 : i32
    %c0_i32_1 = arith.constant 0 : i32
    %c0_i32_2 = arith.constant 0 : i32
    return %c0_i32, %c0_i32_0, %c0_i32_1 : i32, i32, i32
  }
  func.func @transform_2(%arg0: i32) -> (i32, i32) {
    %c0_i32 = arith.constant 0 : i32
    %c0_i32_0 = arith.constant 0 : i32
    %c0_i32_1 = arith.constant 0 : i32
    return %c0_i32, %c0_i32_0 : i32, i32
  }
  func.func @transform_3(%arg0: i32) -> (i32, i32) {
    %c0_i32 = arith.constant 0 : i32
    %c0_i32_0 = arith.constant 0 : i32
    %c0_i32_1 = arith.constant 0 : i32
    return %c0_i32, %c0_i32_0 : i32, i32
  }
  func.func @transform_4(%arg0: i32) -> (i32, i32) {
    %c0_i32 = arith.constant 0 : i32
    %c0_i32_0 = arith.constant 0 : i32
    %c0_i32_1 = arith.constant 0 : i32
    return %c0_i32, %c0_i32_0 : i32, i32
  }
  func.func @transform_5(%arg0: i32) -> (i32, i32) {
    %c0_i32 = arith.constant 0 : i32
    %c0_i32_0 = arith.constant 0 : i32
    %c0_i32_1 = arith.constant 0 : i32
    return %c0_i32, %c0_i32_0 : i32, i32
  }
  func.func @transform_6(%arg0: i32) -> (i32, i32, i32) {
    %c0_i32 = arith.constant 0 : i32
    %c0_i32_0 = arith.constant 0 : i32
    %c0_i32_1 = arith.constant 0 : i32
    %c0_i32_2 = arith.constant 0 : i32
    return %c0_i32, %c0_i32_0, %c0_i32_1 : i32, i32, i32
  }
  func.func @transform_7(%arg0: i32) -> (i32, i32, i32) {
    %c0_i32 = arith.constant 0 : i32
    %c0_i32_0 = arith.constant 0 : i32
    %c0_i32_1 = arith.constant 0 : i32
    %c0_i32_2 = arith.constant 0 : i32
    return %c0_i32, %c0_i32_0, %c0_i32_1 : i32, i32, i32
  }
  func.func @transform_8(%arg0: i32) -> (i32, i32, i32) {
    %c0_i32 = arith.constant 0 : i32
    %c0_i32_0 = arith.constant 0 : i32
    %c0_i32_1 = arith.constant 0 : i32
    return %arg0, %c0_i32, %c0_i32_0 : i32, i32, i32
  }
}

</mosaic_0001>

<llo_original>
// kernel: ts_mixer_forward.2
$region0: #{ts_mixer_forward.2}
  #allocation0 [shape = 'u32[]', space=smem, size = 0x4, offset = 0x4, fixed_abs, tag = 'smem constant byte address 0x4 - core index']
  #allocation1 [shape = 'u32[144,128]{1,0:T(1,128)}', space=vmem, size = 0x12000, scoped, tag = 'internal scratch']
  %s0 = inlined_call_operand.vmem [shape: f32[8,16,4], index: 0, kind: input, shape index: {}]
  %s1 = inlined_call_operand.vmem [shape: f32[1,16,4], index: 1, kind: output, shape index: {0}]
  %s2 = inlined_call_operand.vmem [shape: f32[1,16,4], index: 2, kind: output, shape index: {1}]
  %3 = xla_tuple %s1, %s2
  %s4 = sld [smem:[#allocation0]]
  $region26: #{ts_mixer_forward.2} parent=0
    _
  %s6 = ssub.s32 1, %s4
  %s7 = scalar_select 0, %s6, %s4
  // Predicated region
  $region2: #{ts_mixer_forward.2} parent=0 // pred_check
    _
  $region3: #{ts_mixer_forward.2} parent=0 // pred_check_branch
    %9 = sbr.rel (0) target = $region5
  $region4: #{ts_mixer_forward.2} parent=0 // pred_region
    %s10 = sadd.s32 0, 0
    %s11 = smul.u32 8, %s10
    %p12 = scmp.lt.s32.totalorder %s11, 7
    %s13 = scalar_select %p12, %s11, 7
    %s14 = smul.addr %s13, 2
    %s15 = smul.addr %s14, 8
    %s16 = scalar_lea.vmem %s0, %s15
    %s17 = sadd.s32 0, 0
    %s18 = smul.u32 8, %s17
  $region5: #{ts_mixer_forward.2} parent=0 // pred_fallthru
    _
  %s19 = sadd.s32 0, 0
  %s20 = smul.u32 8, %s19
  %p21 = scmp.lt.s32.totalorder %s20, 7
  %s22 = scalar_select %p21, %s20, 7
  %s23 = smul.addr %s22, 2
  %s24 = smul.addr %s23, 8
  %s25 = scalar_lea.vmem %s0, %s24
  %s26 = sadd.s32 0, 0
  %s27 = smul.u32 8, %s26
  %p28 = scmp.lt.s32.totalorder %s27, 7
  %s29 = scalar_select %p28, %s27, 7
  %s30 = smul.addr %s29, 2
  %s31 = smul.addr %s30, 8
  %s32 = scalar_lea.vmem %s0, %s31
  %s33 = sadd.s32 0, 0
  %s34 = smul.u32 8, %s33
  %v35 = vld [vmem:[%s32] sm:$0xff]
  %v36 = vld [vmem:[%s32 + $0x8] sm:$0xff]
  %v37 = vld [vmem:[%s32 + $0x10] sm:$0xff]
  %v38 = vld [vmem:[%s32 + $0x18] sm:$0xff]
  %v39 = vld [vmem:[%s32 + $0x20] sm:$0xff]
  %v40 = vld [vmem:[%s32 + $0x28] sm:$0xff]
  %v41 = vld [vmem:[%s32 + $0x30] sm:$0xff]
  %v42 = vld [vmem:[%s32 + $0x38] sm:$0xff]
  %v43 = vld [vmem:[%s32 + $0x40] sm:$0xff]
  %v44 = vld [vmem:[%s32 + $0x48] sm:$0xff]
  %v45 = vld [vmem:[%s32 + $0x50] sm:$0xff]
  %v46 = vld [vmem:[%s32 + $0x58] sm:$0xff]
  %v47 = vld [vmem:[%s32 + $0x60] sm:$0xff]
  %v48 = vld [vmem:[%s32 + $0x68] sm:$0xff]
  %v49 = vld [vmem:[%s32 + $0x70] sm:$0xff]
  %v50 = vld [vmem:[%s32 + $0x78] sm:$0xff]
  %vm51 = vcmask 31744
  %v52 = vsel %vm51, %v35, 0.0
  %v53 = vsel %vm51, %v36, 0.0
  %v54 = vadd.f32 %v52, %v53
  %v55 = vrot.slane %v54, 4
  %v56 = vadd.f32 %v54, %v55
  %v57 = vrot.slane %v56, 2
  %v58 = vadd.f32 %v56, %v57
  %v59 = vrot.slane %v58, 1
  %v60 = vadd.f32 %v58, %v59
  %v61 = vsel %vm51, %v37, 0.0
  %v62 = vsel %vm51, %v38, 0.0
  %v63 = vadd.f32 %v61, %v62
  %v64 = vrot.slane %v63, 4
  %v65 = vadd.f32 %v63, %v64
  %v66 = vrot.slane %v65, 2
  %v67 = vadd.f32 %v65, %v66
  %v68 = vrot.slane %v67, 1
  %v69 = vadd.f32 %v67, %v68
  %v70 = vsel %vm51, %v39, 0.0
  %v71 = vsel %vm51, %v40, 0.0
  %v72 = vadd.f32 %v70, %v71
  %v73 = vrot.slane %v72, 4
  %v74 = vadd.f32 %v72, %v73
  %v75 = vrot.slane %v74, 2
  %v76 = vadd.f32 %v74, %v75
  %v77 = vrot.slane %v76, 1
  %v78 = vadd.f32 %v76, %v77
  %v79 = vsel %vm51, %v41, 0.0
  %v80 = vsel %vm51, %v42, 0.0
  %v81 = vadd.f32 %v79, %v80
  %v82 = vrot.slane %v81, 4
  %v83 = vadd.f32 %v81, %v82
  %v84 = vrot.slane %v83, 2
  %v85 = vadd.f32 %v83, %v84
  %v86 = vrot.slane %v85, 1
  %v87 = vadd.f32 %v85, %v86
  %v88 = vsel %vm51, %v43, 0.0
  %v89 = vsel %vm51, %v44, 0.0
  %v90 = vadd.f32 %v88, %v89
  %v91 = vrot.slane %v90, 4
  %v92 = vadd.f32 %v90, %v91
  %v93 = vrot.slane %v92, 2
  %v94 = vadd.f32 %v92, %v93
  %v95 = vrot.slane %v94, 1
  %v96 = vadd.f32 %v94, %v95
  %v97 = vsel %vm51, %v45, 0.0
  %v98 = vsel %vm51, %v46, 0.0
  %v99 = vadd.f32 %v97, %v98
  %v100 = vrot.slane %v99, 4
  %v101 = vadd.f32 %v99, %v100
  %v102 = vrot.slane %v101, 2
  %v103 = vadd.f32 %v101, %v102
  %v104 = vrot.slane %v103, 1
  %v105 = vadd.f32 %v103, %v104
  %v106 = vsel %vm51, %v47, 0.0
  %v107 = vsel %vm51, %v48, 0.0
  %v108 = vadd.f32 %v106, %v107
  %v109 = vrot.slane %v108, 4
  %v110 = vadd.f32 %v108, %v109
  %v111 = vrot.slane %v110, 2
  %v112 = vadd.f32 %v110, %v111
  %v113 = vrot.slane %v112, 1
  %v114 = vadd.f32 %v112, %v113
  %v115 = vsel %vm51, %v49, 0.0
  %v116 = vsel %vm51, %v50, 0.0
  %v117 = vadd.f32 %v115, %v116
  %v118 = vrot.slane %v117, 4
  %v119 = vadd.f32 %v117, %v118
  %v120 = vrot.slane %v119, 2
  %v121 = vadd.f32 %v119, %v120
  %v122 = vrot.slane %v121, 1
  %v123 = vadd.f32 %v121, %v122
  %v124 = vrcp.pop 16.0
  %v125 = vmul.f32 %v60, %v124
  %v126 = vmul.f32 %v69, %v124
  %v127 = vmul.f32 %v78, %v124
  %v128 = vmul.f32 %v87, %v124
  %v129 = vmul.f32 %v96, %v124
  %v130 = vmul.f32 %v105, %v124
  %v131 = vmul.f32 %v114, %v124
  %v132 = vmul.f32 %v123, %v124
  %v133 = vsub.f32 %v35, %v125
  %v134 = vsub.f32 %v36, %v125
  %v135 = vsub.f32 %v37, %v126
  %v136 = vsub.f32 %v38, %v126
  %v137 = vsub.f32 %v39, %v127
  %v138 = vsub.f32 %v40, %v127
  %v139 = vsub.f32 %v41, %v128
  %v140 = vsub.f32 %v42, %v128
  %v141 = vsub.f32 %v43, %v129
  %v142 = vsub.f32 %v44, %v129
  %v143 = vsub.f32 %v45, %v130
  %v144 = vsub.f32 %v46, %v130
  %v145 = vsub.f32 %v47, %v131
  %v146 = vsub.f32 %v48, %v131
  %v147 = vsub.f32 %v49, %v132
  %v148 = vsub.f32 %v50, %v132
  %v149 = vmul.f32 %v133, %v133
  %v150 = vmul.f32 %v134, %v134
  %v151 = vmul.f32 %v135, %v135
  %v152 = vmul.f32 %v136, %v136
  %v153 = vmul.f32 %v137, %v137
  %v154 = vmul.f32 %v138, %v138
  %v155 = vmul.f32 %v139, %v139
  %v156 = vmul.f32 %v140, %v140
  %v157 = vmul.f32 %v141, %v141
  %v158 = vmul.f32 %v142, %v142
  %v159 = vmul.f32 %v143, %v143
  %v160 = vmul.f32 %v144, %v144
  %v161 = vmul.f32 %v145, %v145
  %v162 = vmul.f32 %v146, %v146
  %v163 = vmul.f32 %v147, %v147
  %v164 = vmul.f32 %v148, %v148
  %v165 = vsel %vm51, %v149, 0.0
  %v166 = vsel %vm51, %v150, 0.0
  %v167 = vadd.f32 %v165, %v166
  %v168 = vrot.slane %v167, 4
  %v169 = vadd.f32 %v167, %v168
  %v170 = vrot.slane %v169, 2
  %v171 = vadd.f32 %v169, %v170
  %v172 = vrot.slane %v171, 1
  %v173 = vadd.f32 %v171, %v172
  %v174 = vsel %vm51, %v151, 0.0
  %v175 = vsel %vm51, %v152, 0.0
  %v176 = vadd.f32 %v174, %v175
  %v177 = vrot.slane %v176, 4
  %v178 = vadd.f32 %v176, %v177
  %v179 = vrot.slane %v178, 2
  %v180 = vadd.f32 %v178, %v179
  %v181 = vrot.slane %v180, 1
  %v182 = vadd.f32 %v180, %v181
  %v183 = vsel %vm51, %v153, 0.0
  %v184 = vsel %vm51, %v154, 0.0
  %v185 = vadd.f32 %v183, %v184
  %v186 = vrot.slane %v185, 4
  %v187 = vadd.f32 %v185, %v186
  %v188 = vrot.slane %v187, 2
  %v189 = vadd.f32 %v187, %v188
  %v190 = vrot.slane %v189, 1
  %v191 = vadd.f32 %v189, %v190
  %v192 = vsel %vm51, %v155, 0.0
  %v193 = vsel %vm51, %v156, 0.0
  %v194 = vadd.f32 %v192, %v193
  %v195 = vrot.slane %v194, 4
  %v196 = vadd.f32 %v194, %v195
  %v197 = vrot.slane %v196, 2
  %v198 = vadd.f32 %v196, %v197
  %v199 = vrot.slane %v198, 1
  %v200 = vadd.f32 %v198, %v199
  %v201 = vsel %vm51, %v157, 0.0
  %v202 = vsel %vm51, %v158, 0.0
  %v203 = vadd.f32 %v201, %v202
  %v204 = vrot.slane %v203, 4
  %v205 = vadd.f32 %v203, %v204
  %v206 = vrot.slane %v205, 2
  %v207 = vadd.f32 %v205, %v206
  %v208 = vrot.slane %v207, 1
  %v209 = vadd.f32 %v207, %v208
  %v210 = vsel %vm51, %v159, 0.0
  %v211 = vsel %vm51, %v160, 0.0
  %v212 = vadd.f32 %v210, %v211
  %v213 = vrot.slane %v212, 4
  %v214 = vadd.f32 %v212, %v213
  %v215 = vrot.slane %v214, 2
  %v216 = vadd.f32 %v214, %v215
  %v217 = vrot.slane %v216, 1
  %v218 = vadd.f32 %v216, %v217
  %v219 = vsel %vm51, %v161, 0.0
  %v220 = vsel %vm51, %v162, 0.0
  %v221 = vadd.f32 %v219, %v220
  %v222 = vrot.slane %v221, 4
  %v223 = vadd.f32 %v221, %v222
  %v224 = vrot.slane %v223, 2
  %v225 = vadd.f32 %v223, %v224
  %v226 = vrot.slane %v225, 1
  %v227 = vadd.f32 %v225, %v226
  %v228 = vsel %vm51, %v163, 0.0
  %v229 = vsel %vm51, %v164, 0.0
  %v230 = vadd.f32 %v228, %v229
  %v231 = vrot.slane %v230, 4
  %v232 = vadd.f32 %v230, %v231
  %v233 = vrot.slane %v232, 2
  %v234 = vadd.f32 %v232, %v233
  %v235 = vrot.slane %v234, 1
  %v236 = vadd.f32 %v234, %v235
  %v237 = vmul.f32 %v173, %v124
  %v238 = vmul.f32 %v182, %v124
  %v239 = vmul.f32 %v191, %v124
  %v240 = vmul.f32 %v200, %v124
  %v241 = vmul.f32 %v209, %v124
  %v242 = vmul.f32 %v218, %v124
  %v243 = vmul.f32 %v227, %v124
  %v244 = vmul.f32 %v236, %v124
  %v245 = vadd.f32 %v237, 1e-05
  %v246 = vadd.f32 %v238, 1e-05
  %v247 = vadd.f32 %v239, 1e-05
  %v248 = vadd.f32 %v240, 1e-05
  %v249 = vadd.f32 %v241, 1e-05
  %v250 = vadd.f32 %v242, 1e-05
  %v251 = vadd.f32 %v243, 1e-05
  %v252 = vadd.f32 %v244, 1e-05
  %v253 = vrsqrt.pop %v245
  %v254 = vrsqrt.pop %v246
  %v255 = vrsqrt.pop %v247
  %v256 = vrsqrt.pop %v248
  %v257 = vrsqrt.pop %v249
  %v258 = vrsqrt.pop %v250
  %v259 = vrsqrt.pop %v251
  %v260 = vrsqrt.pop %v252
  %v261 = vlaneseq
  %v262 = vshrl.u32 %v261, 7
  %v263 = vsub.s32 7, %v262
  %v264 = vrot.slane %v36, %v263
  %v265 = vlaneseq
  %v266 = vshrl.u32 %v265, 7
  %v267 = vsub.s32 7, %v266
  %v268 = vrot.slane %v38, %v267
  %v269 = vlaneseq
  %v270 = vshrl.u32 %v269, 7
  %v271 = vsub.s32 7, %v270
  %v272 = vrot.slane %v40, %v271
  %v273 = vlaneseq
  %v274 = vshrl.u32 %v273, 7
  %v275 = vsub.s32 7, %v274
  %v276 = vrot.slane %v42, %v275
  %v277 = vlaneseq
  %v278 = vshrl.u32 %v277, 7
  %v279 = vsub.s32 7, %v278
  %v280 = vrot.slane %v44, %v279
  %v281 = vlaneseq
  %v282 = vshrl.u32 %v281, 7
  %v283 = vsub.s32 7, %v282
  %v284 = vrot.slane %v46, %v283
  %v285 = vlaneseq
  %v286 = vshrl.u32 %v285, 7
  %v287 = vsub.s32 7, %v286
  %v288 = vrot.slane %v48, %v287
  %v289 = vlaneseq
  %v290 = vshrl.u32 %v289, 7
  %v291 = vsub.s32 7, %v290
  %v292 = vrot.slane %v50, %v291
  %v293 = vsub.f32 %v35, %v264
  %v294 = vsub.f32 %v36, %v264
  %v295 = vsub.f32 %v37, %v268
  %v296 = vsub.f32 %v38, %v268
  %v297 = vsub.f32 %v39, %v272
  %v298 = vsub.f32 %v40, %v272
  %v299 = vsub.f32 %v41, %v276
  %v300 = vsub.f32 %v42, %v276
  %v301 = vsub.f32 %v43, %v280
  %v302 = vsub.f32 %v44, %v280
  %v303 = vsub.f32 %v45, %v284
  %v304 = vsub.f32 %v46, %v284
  %v305 = vsub.f32 %v47, %v288
  %v306 = vsub.f32 %v48, %v288
  %v307 = vsub.f32 %v49, %v292
  %v308 = vsub.f32 %v50, %v292
  %v309 = vmul.f32 %v293, %v253
  %v310 = vmul.f32 %v294, %v253
  %v311 = vmul.f32 %v295, %v254
  %v312 = vmul.f32 %v296, %v254
  %v313 = vmul.f32 %v297, %v255
  %v314 = vmul.f32 %v298, %v255
  %v315 = vmul.f32 %v299, %v256
  %v316 = vmul.f32 %v300, %v256
  %v317 = vmul.f32 %v301, %v257
  %v318 = vmul.f32 %v302, %v257
  %v319 = vmul.f32 %v303, %v258
  %v320 = vmul.f32 %v304, %v258
  %v321 = vmul.f32 %v305, %v259
  %v322 = vmul.f32 %v306, %v259
  %v323 = vmul.f32 %v307, %v260
  %v324 = vmul.f32 %v308, %v260
  %p325 = scmp.eq.s32.totalorder 0, 0
  // Predicated region
  $region6: #{ts_mixer_forward.2} parent=0 // pred_check
    %p326 = pneg %p325
  $region7: #{ts_mixer_forward.2} parent=0 // pred_check_branch
    %328 = sbr.rel (%p326) target = $region9
  $region8: #{ts_mixer_forward.2} parent=0 // pred_region
    %329 = vst.msk [vmem:[%s1] sm:$0xff] %vm51, 0.0
    %330 = vst.msk [vmem:[%s1 + $0x8] sm:$0xff] %vm51, 0.0
    %331 = vst.msk [vmem:[%s2] sm:$0xff] %vm51, 0.0
    %332 = vst.msk [vmem:[%s2 + $0x8] sm:$0xff] %vm51, 0.0
  $region9: #{ts_mixer_forward.2} parent=0 // pred_fallthru
    _
  %v333 = vld [vmem:[%s1] sm:$0xff]
  %v334 = vld [vmem:[%s1 + $0x8] sm:$0xff]
  %v335 = vsel %vm51, %v309, 0.0
  %v336 = vsel %vm51, %v311, 0.0
  %v337 = vadd.f32 %v335, %v336
  %v338 = vsel %vm51, %v313, 0.0
  %v339 = vadd.f32 %v337, %v338
  %v340 = vsel %vm51, %v315, 0.0
  %v341 = vadd.f32 %v339, %v340
  %v342 = vsel %vm51, %v317, 0.0
  %v343 = vadd.f32 %v341, %v342
  %v344 = vsel %vm51, %v319, 0.0
  %v345 = vadd.f32 %v343, %v344
  %v346 = vsel %vm51, %v321, 0.0
  %v347 = vadd.f32 %v345, %v346
  %v348 = vsel %vm51, %v323, 0.0
  %v349 = vadd.f32 %v347, %v348
  %v350 = vsel %vm51, %v310, 0.0
  %v351 = vsel %vm51, %v312, 0.0
  %v352 = vadd.f32 %v350, %v351
  %v353 = vsel %vm51, %v314, 0.0
  %v354 = vadd.f32 %v352, %v353
  %v355 = vsel %vm51, %v316, 0.0
  %v356 = vadd.f32 %v354, %v355
  %v357 = vsel %vm51, %v318, 0.0
  %v358 = vadd.f32 %v356, %v357
  %v359 = vsel %vm51, %v320, 0.0
  %v360 = vadd.f32 %v358, %v359
  %v361 = vsel %vm51, %v322, 0.0
  %v362 = vadd.f32 %v360, %v361
  %v363 = vsel %vm51, %v324, 0.0
  %v364 = vadd.f32 %v362, %v363
  %v365 = vadd.f32 %v333, %v349
  %v366 = vadd.f32 %v334, %v364
  %367 = vst.msk [vmem:[%s1] sm:$0xff] %vm51, %v365
  %368 = vst.msk [vmem:[%s1 + $0x8] sm:$0xff] %vm51, %v366
  %v369 = vld [vmem:[%s2] sm:$0xff]
  %v370 = vld [vmem:[%s2 + $0x8] sm:$0xff]
  %v371 = vmul.f32 %v309, %v309
  %v372 = vmul.f32 %v310, %v310
  %v373 = vmul.f32 %v311, %v311
  %v374 = vmul.f32 %v312, %v312
  %v375 = vmul.f32 %v313, %v313
  %v376 = vmul.f32 %v314, %v314
  %v377 = vmul.f32 %v315, %v315
  %v378 = vmul.f32 %v316, %v316
  %v379 = vmul.f32 %v317, %v317
  %v380 = vmul.f32 %v318, %v318
  %v381 = vmul.f32 %v319, %v319
  %v382 = vmul.f32 %v320, %v320
  %v383 = vmul.f32 %v321, %v321
  %v384 = vmul.f32 %v322, %v322
  %v385 = vmul.f32 %v323, %v323
  %v386 = vmul.f32 %v324, %v324
  %v387 = vsel %vm51, %v371, 0.0
  %v388 = vsel %vm51, %v373, 0.0
  %v389 = vadd.f32 %v387, %v388
  %v390 = vsel %vm51, %v375, 0.0
  %v391 = vadd.f32 %v389, %v390
  %v392 = vsel %vm51, %v377, 0.0
  %v393 = vadd.f32 %v391, %v392
  %v394 = vsel %vm51, %v379, 0.0
  %v395 = vadd.f32 %v393, %v394
  %v396 = vsel %vm51, %v381, 0.0
  %v397 = vadd.f32 %v395, %v396
  %v398 = vsel %vm51, %v383, 0.0
  %v399 = vadd.f32 %v397, %v398
  %v400 = vsel %vm51, %v385, 0.0
  %v401 = vadd.f32 %v399, %v400
  %v402 = vsel %vm51, %v372, 0.0
  %v403 = vsel %vm51, %v374, 0.0
  %v404 = vadd.f32 %v402, %v403
  %v405 = vsel %vm51, %v376, 0.0
  %v406 = vadd.f32 %v404, %v405
  %v407 = vsel %vm51, %v378, 0.0
  %v408 = vadd.f32 %v406, %v407
  %v409 = vsel %vm51, %v380, 0.0
  %v410 = vadd.f32 %v408, %v409
  %v411 = vsel %vm51, %v382, 0.0
  %v412 = vadd.f32 %v410, %v411
  %v413 = vsel %vm51, %v384, 0.0
  %v414 = vadd.f32 %v412, %v413
  %v415 = vsel %vm51, %v386, 0.0
  %v416 = vadd.f32 %v414, %v415
  %v417 = vadd.f32 %v369, %v401
  %v418 = vadd.f32 %v370, %v416
  %419 = vst.msk [vmem:[%s2] sm:$0xff] %vm51, %v417
  %420 = vst.msk [vmem:[%s2 + $0x8] sm:$0xff] %vm51, %v418
  // Predicated region
  $region10: #{ts_mixer_forward.2} parent=0 // pred_check
    _
  $region11: #{ts_mixer_forward.2} parent=0 // pred_check_branch
    %422 = sbr.rel (0) target = $region13
  $region12: #{ts_mixer_forward.2} parent=0 // pred_region
    _
  $region13: #{ts_mixer_forward.2} parent=0 // pred_fallthru
    _
  // Predicated region
  $region14: #{ts_mixer_forward.2} parent=0 // pred_check
    _
  $region15: #{ts_mixer_forward.2} parent=0 // pred_check_branch
    %424 = sbr.rel (0) target = $region17
  $region16: #{ts_mixer_forward.2} parent=0 // pred_region
    _
  $region17: #{ts_mixer_forward.2} parent=0 // pred_fallthru
    _
  // Predicated region
  $region18: #{ts_mixer_forward.2} parent=0 // pred_check
    _
  $region19: #{ts_mixer_forward.2} parent=0 // pred_check_branch
    %426 = sbr.rel (0) target = $region21
  $region20: #{ts_mixer_forward.2} parent=0 // pred_region
    _
  $region21: #{ts_mixer_forward.2} parent=0 // pred_fallthru
    _
  // Predicated region
  $region22: #{ts_mixer_forward.2} parent=0 // pred_check
    _
  $region23: #{ts_mixer_forward.2} parent=0 // pred_check_branch
    %428 = sbr.rel (0) target = $region25
  $region24: #{ts_mixer_forward.2} parent=0 // pred_region
    _
  $region25: #{ts_mixer_forward.2} parent=0 // pred_fallthru
    _

// kernel: ts_mixer_forward.3
$region0: #{ts_mixer_forward.3}
  #allocation0 [shape = 'u32[]', space=smem, size = 0x4, offset = 0x4, fixed_abs, tag = 'smem constant byte address 0x4 - core index']
  #allocation1 [shape = 'u32[144,128]{1,0:T(1,128)}', space=vmem, size = 0x12000, scoped, tag = 'internal scratch']
  %s0 = inlined_call_operand.vmem [shape: f32[8,16,4], index: 0, kind: input, shape index: {}]
  %s1 = inlined_call_operand.vmem [shape: f32[2,16,4], index: 1, kind: input, shape index: {}]
  %s2 = inlined_call_operand.vmem [shape: f32[4,4], index: 2, kind: input, shape index: {}]
  %s3 = inlined_call_operand.vmem [shape: f32[1,4], index: 3, kind: input, shape index: {}]
  %s4 = inlined_call_operand.vmem [shape: f32[4,4], index: 4, kind: input, shape index: {}]
  %s5 = inlined_call_operand.vmem [shape: f32[1,4], index: 5, kind: input, shape index: {}]
  %s6 = inlined_call_operand.vmem [shape: f32[1,8,16], index: 6, kind: input, shape index: {}]
  %s7 = inlined_call_operand.vmem [shape: f32[1,8,4], index: 7, kind: input, shape index: {}]
  %s8 = inlined_call_operand.vmem [shape: f32[8,8,4], index: 8, kind: output, shape index: {}]
  %s9 = sld [smem:[#allocation0]]
  $region42: #{ts_mixer_forward.3} parent=0
    _
  %s11 = ssub.s32 1, %s9
  %s12 = scalar_select 0, %s11, %s9
  // Predicated region
  $region2: #{ts_mixer_forward.3} parent=0 // pred_check
    _
  $region3: #{ts_mixer_forward.3} parent=0 // pred_check_branch
    %14 = sbr.rel (0) target = $region5
  $region4: #{ts_mixer_forward.3} parent=0 // pred_region
    _
  $region5: #{ts_mixer_forward.3} parent=0 // pred_fallthru
    _
  // Predicated region
  $region6: #{ts_mixer_forward.3} parent=0 // pred_check
    _
  $region7: #{ts_mixer_forward.3} parent=0 // pred_check_branch
    %16 = sbr.rel (0) target = $region9
  $region8: #{ts_mixer_forward.3} parent=0 // pred_region
    _
  $region9: #{ts_mixer_forward.3} parent=0 // pred_fallthru
    _
  // Predicated region
  $region10: #{ts_mixer_forward.3} parent=0 // pred_check
    _
  $region11: #{ts_mixer_forward.3} parent=0 // pred_check_branch
    %18 = sbr.rel (0) target = $region13
  $region12: #{ts_mixer_forward.3} parent=0 // pred_region
    _
  $region13: #{ts_mixer_forward.3} parent=0 // pred_fallthru
    _
  // Predicated region
  $region14: #{ts_mixer_forward.3} parent=0 // pred_check
    _
  $region15: #{ts_mixer_forward.3} parent=0 // pred_check_branch
    %20 = sbr.rel (0) target = $region17
  $region16: #{ts_mixer_forward.3} parent=0 // pred_region
    _
  $region17: #{ts_mixer_forward.3} parent=0 // pred_fallthru
    _
  // Predicated region
  $region18: #{ts_mixer_forward.3} parent=0 // pred_check
    _
  $region19: #{ts_mixer_forward.3} parent=0 // pred_check_branch
    %22 = sbr.rel (0) target = $region21
  $region20: #{ts_mixer_forward.3} parent=0 // pred_region
    _
  $region21: #{ts_mixer_forward.3} parent=0 // pred_fallthru
    _
  // Predicated region
  $region22: #{ts_mixer_forward.3} parent=0 // pred_check
    _
  $region23: #{ts_mixer_forward.3} parent=0 // pred_check_branch
    %24 = sbr.rel (0) target = $region25
  $region24: #{ts_mixer_forward.3} parent=0 // pred_region
    _
  $region25: #{ts_mixer_forward.3} parent=0 // pred_fallthru
    _
  // Predicated region
  $region26: #{ts_mixer_forward.3} parent=0 // pred_check
    _
  $region27: #{ts_mixer_forward.3} parent=0 // pred_check_branch
    %26 = sbr.rel (0) target = $region29
  $region28: #{ts_mixer_forward.3} parent=0 // pred_region
    _
  $region29: #{ts_mixer_forward.3} parent=0 // pred_fallthru
    _
  // Predicated region
  $region30: #{ts_mixer_forward.3} parent=0 // pred_check
    _
  $region31: #{ts_mixer_forward.3} parent=0 // pred_check_branch
    %28 = sbr.rel (0) target = $region33
  $region32: #{ts_mixer_forward.3} parent=0 // pred_region
    _
  $region33: #{ts_mixer_forward.3} parent=0 // pred_fallthru
    _
  %v29 = vld [vmem:[%s0] sm:$0xff]
  %v30 = vld [vmem:[%s0 + $0x8] sm:$0xff]
  %v31 = vld [vmem:[%s0 + $0x10] sm:$0xff]
  %v32 = vld [vmem:[%s0 + $0x18] sm:$0xff]
  %v33 = vld [vmem:[%s0 + $0x20] sm:$0xff]
  %v34 = vld [vmem:[%s0 + $0x28] sm:$0xff]
  %v35 = vld [vmem:[%s0 + $0x30] sm:$0xff]
  %v36 = vld [vmem:[%s0 + $0x38] sm:$0xff]
  %v37 = vld [vmem:[%s0 + $0x40] sm:$0xff]
  %v38 = vld [vmem:[%s0 + $0x48] sm:$0xff]
  %v39 = vld [vmem:[%s0 + $0x50] sm:$0xff]
  %v40 = vld [vmem:[%s0 + $0x58] sm:$0xff]
  %v41 = vld [vmem:[%s0 + $0x60] sm:$0xff]
  %v42 = vld [vmem:[%s0 + $0x68] sm:$0xff]
  %v43 = vld [vmem:[%s0 + $0x70] sm:$0xff]
  %v44 = vld [vmem:[%s0 + $0x78] sm:$0xff]
  %vm45 = vcmask 31744
  %v46 = vsel %vm45, %v29, 0.0
  %v47 = vsel %vm45, %v30, 0.0
  %v48 = vadd.f32 %v46, %v47
  %v49 = vrot.slane %v48, 4
  %v50 = vadd.f32 %v48, %v49
  %v51 = vrot.slane %v50, 2
  %v52 = vadd.f32 %v50, %v51
  %v53 = vrot.slane %v52, 1
  %v54 = vadd.f32 %v52, %v53
  %v55 = vsel %vm45, %v31, 0.0
  %v56 = vsel %vm45, %v32, 0.0
  %v57 = vadd.f32 %v55, %v56
  %v58 = vrot.slane %v57, 4
  %v59 = vadd.f32 %v57, %v58
  %v60 = vrot.slane %v59, 2
  %v61 = vadd.f32 %v59, %v60
  %v62 = vrot.slane %v61, 1
  %v63 = vadd.f32 %v61, %v62
  %v64 = vsel %vm45, %v33, 0.0
  %v65 = vsel %vm45, %v34, 0.0
  %v66 = vadd.f32 %v64, %v65
  %v67 = vrot.slane %v66, 4
  %v68 = vadd.f32 %v66, %v67
  %v69 = vrot.slane %v68, 2
  %v70 = vadd.f32 %v68, %v69
  %v71 = vrot.slane %v70, 1
  %v72 = vadd.f32 %v70, %v71
  %v73 = vsel %vm45, %v35, 0.0
  %v74 = vsel %vm45, %v36, 0.0
  %v75 = vadd.f32 %v73, %v74
  %v76 = vrot.slane %v75, 4
  %v77 = vadd.f32 %v75, %v76
  %v78 = vrot.slane %v77, 2
  %v79 = vadd.f32 %v77, %v78
  %v80 = vrot.slane %v79, 1
  %v81 = vadd.f32 %v79, %v80
  %v82 = vsel %vm45, %v37, 0.0
  %v83 = vsel %vm45, %v38, 0.0
  %v84 = vadd.f32 %v82, %v83
  %v85 = vrot.slane %v84, 4
  %v86 = vadd.f32 %v84, %v85
  %v87 = vrot.slane %v86, 2
  %v88 = vadd.f32 %v86, %v87
  %v89 = vrot.slane %v88, 1
  %v90 = vadd.f32 %v88, %v89
  %v91 = vsel %vm45, %v39, 0.0
  %v92 = vsel %vm45, %v40, 0.0
  %v93 = vadd.f32 %v91, %v92
  %v94 = vrot.slane %v93, 4
  %v95 = vadd.f32 %v93, %v94
  %v96 = vrot.slane %v95, 2
  %v97 = vadd.f32 %v95, %v96
  %v98 = vrot.slane %v97, 1
  %v99 = vadd.f32 %v97, %v98
  %v100 = vsel %vm45, %v41, 0.0
  %v101 = vsel %vm45, %v42, 0.0
  %v102 = vadd.f32 %v100, %v101
  %v103 = vrot.slane %v102, 4
  %v104 = vadd.f32 %v102, %v103
  %v105 = vrot.slane %v104, 2
  %v106 = vadd.f32 %v104, %v105
  %v107 = vrot.slane %v106, 1
  %v108 = vadd.f32 %v106, %v107
  %v109 = vsel %vm45, %v43, 0.0
  %v110 = vsel %vm45, %v44, 0.0
  %v111 = vadd.f32 %v109, %v110
  %v112 = vrot.slane %v111, 4
  %v113 = vadd.f32 %v111, %v112
  %v114 = vrot.slane %v113, 2
  %v115 = vadd.f32 %v113, %v114
  %v116 = vrot.slane %v115, 1
  %v117 = vadd.f32 %v115, %v116
  %v118 = vrcp.pop 16.0
  %v119 = vmul.f32 %v54, %v118
  %v120 = vmul.f32 %v63, %v118
  %v121 = vmul.f32 %v72, %v118
  %v122 = vmul.f32 %v81, %v118
  %v123 = vmul.f32 %v90, %v118
  %v124 = vmul.f32 %v99, %v118
  %v125 = vmul.f32 %v108, %v118
  %v126 = vmul.f32 %v117, %v118
  %v127 = vsub.f32 %v29, %v119
  %v128 = vsub.f32 %v30, %v119
  %v129 = vsub.f32 %v31, %v120
  %v130 = vsub.f32 %v32, %v120
  %v131 = vsub.f32 %v33, %v121
  %v132 = vsub.f32 %v34, %v121
  %v133 = vsub.f32 %v35, %v122
  %v134 = vsub.f32 %v36, %v122
  %v135 = vsub.f32 %v37, %v123
  %v136 = vsub.f32 %v38, %v123
  %v137 = vsub.f32 %v39, %v124
  %v138 = vsub.f32 %v40, %v124
  %v139 = vsub.f32 %v41, %v125
  %v140 = vsub.f32 %v42, %v125
  %v141 = vsub.f32 %v43, %v126
  %v142 = vsub.f32 %v44, %v126
  %v143 = vmul.f32 %v127, %v127
  %v144 = vmul.f32 %v128, %v128
  %v145 = vmul.f32 %v129, %v129
  %v146 = vmul.f32 %v130, %v130
  %v147 = vmul.f32 %v131, %v131
  %v148 = vmul.f32 %v132, %v132
  %v149 = vmul.f32 %v133, %v133
  %v150 = vmul.f32 %v134, %v134
  %v151 = vmul.f32 %v135, %v135
  %v152 = vmul.f32 %v136, %v136
  %v153 = vmul.f32 %v137, %v137
  %v154 = vmul.f32 %v138, %v138
  %v155 = vmul.f32 %v139, %v139
  %v156 = vmul.f32 %v140, %v140
  %v157 = vmul.f32 %v141, %v141
  %v158 = vmul.f32 %v142, %v142
  %v159 = vsel %vm45, %v143, 0.0
  %v160 = vsel %vm45, %v144, 0.0
  %v161 = vadd.f32 %v159, %v160
  %v162 = vrot.slane %v161, 4
  %v163 = vadd.f32 %v161, %v162
  %v164 = vrot.slane %v163, 2
  %v165 = vadd.f32 %v163, %v164
  %v166 = vrot.slane %v165, 1
  %v167 = vadd.f32 %v165, %v166
  %v168 = vsel %vm45, %v145, 0.0
  %v169 = vsel %vm45, %v146, 0.0
  %v170 = vadd.f32 %v168, %v169
  %v171 = vrot.slane %v170, 4
  %v172 = vadd.f32 %v170, %v171
  %v173 = vrot.slane %v172, 2
  %v174 = vadd.f32 %v172, %v173
  %v175 = vrot.slane %v174, 1
  %v176 = vadd.f32 %v174, %v175
  %v177 = vsel %vm45, %v147, 0.0
  %v178 = vsel %vm45, %v148, 0.0
  %v179 = vadd.f32 %v177, %v178
  %v180 = vrot.slane %v179, 4
  %v181 = vadd.f32 %v179, %v180
  %v182 = vrot.slane %v181, 2
  %v183 = vadd.f32 %v181, %v182
  %v184 = vrot.slane %v183, 1
  %v185 = vadd.f32 %v183, %v184
  %v186 = vsel %vm45, %v149, 0.0
  %v187 = vsel %vm45, %v150, 0.0
  %v188 = vadd.f32 %v186, %v187
  %v189 = vrot.slane %v188, 4
  %v190 = vadd.f32 %v188, %v189
  %v191 = vrot.slane %v190, 2
  %v192 = vadd.f32 %v190, %v191
  %v193 = vrot.slane %v192, 1
  %v194 = vadd.f32 %v192, %v193
  %v195 = vsel %vm45, %v151, 0.0
  %v196 = vsel %vm45, %v152, 0.0
  %v197 = vadd.f32 %v195, %v196
  %v198 = vrot.slane %v197, 4
  %v199 = vadd.f32 %v197, %v198
  %v200 = vrot.slane %v199, 2
  %v201 = vadd.f32 %v199, %v200
  %v202 = vrot.slane %v201, 1
  %v203 = vadd.f32 %v201, %v202
  %v204 = vsel %vm45, %v153, 0.0
  %v205 = vsel %vm45, %v154, 0.0
  %v206 = vadd.f32 %v204, %v205
  %v207 = vrot.slane %v206, 4
  %v208 = vadd.f32 %v206, %v207
  %v209 = vrot.slane %v208, 2
  %v210 = vadd.f32 %v208, %v209
  %v211 = vrot.slane %v210, 1
  %v212 = vadd.f32 %v210, %v211
  %v213 = vsel %vm45, %v155, 0.0
  %v214 = vsel %vm45, %v156, 0.0
  %v215 = vadd.f32 %v213, %v214
  %v216 = vrot.slane %v215, 4
  %v217 = vadd.f32 %v215, %v216
  %v218 = vrot.slane %v217, 2
  %v219 = vadd.f32 %v217, %v218
  %v220 = vrot.slane %v219, 1
  %v221 = vadd.f32 %v219, %v220
  %v222 = vsel %vm45, %v157, 0.0
  %v223 = vsel %vm45, %v158, 0.0
  %v224 = vadd.f32 %v222, %v223
  %v225 = vrot.slane %v224, 4
  %v226 = vadd.f32 %v224, %v225
  %v227 = vrot.slane %v226, 2
  %v228 = vadd.f32 %v226, %v227
  %v229 = vrot.slane %v228, 1
  %v230 = vadd.f32 %v228, %v229
  %v231 = vmul.f32 %v167, %v118
  %v232 = vmul.f32 %v176, %v118
  %v233 = vmul.f32 %v185, %v118
  %v234 = vmul.f32 %v194, %v118
  %v235 = vmul.f32 %v203, %v118
  %v236 = vmul.f32 %v212, %v118
  %v237 = vmul.f32 %v221, %v118
  %v238 = vmul.f32 %v230, %v118
  %v239 = vadd.f32 %v231, 1e-05
  %v240 = vadd.f32 %v232, 1e-05
  %v241 = vadd.f32 %v233, 1e-05
  %v242 = vadd.f32 %v234, 1e-05
  %v243 = vadd.f32 %v235, 1e-05
  %v244 = vadd.f32 %v236, 1e-05
  %v245 = vadd.f32 %v237, 1e-05
  %v246 = vadd.f32 %v238, 1e-05
  %v247 = vrsqrt.pop %v239
  %v248 = vrsqrt.pop %v240
  %v249 = vrsqrt.pop %v241
  %v250 = vrsqrt.pop %v242
  %v251 = vrsqrt.pop %v243
  %v252 = vrsqrt.pop %v244
  %v253 = vrsqrt.pop %v245
  %v254 = vrsqrt.pop %v246
  %v255 = vlaneseq
  %v256 = vshrl.u32 %v255, 7
  %v257 = vsub.s32 7, %v256
  %v258 = vrot.slane %v30, %v257
  %v259 = vlaneseq
  %v260 = vshrl.u32 %v259, 7
  %v261 = vsub.s32 7, %v260
  %v262 = vrot.slane %v32, %v261
  %v263 = vlaneseq
  %v264 = vshrl.u32 %v263, 7
  %v265 = vsub.s32 7, %v264
  %v266 = vrot.slane %v34, %v265
  %v267 = vlaneseq
  %v268 = vshrl.u32 %v267, 7
  %v269 = vsub.s32 7, %v268
  %v270 = vrot.slane %v36, %v269
  %v271 = vlaneseq
  %v272 = vshrl.u32 %v271, 7
  %v273 = vsub.s32 7, %v272
  %v274 = vrot.slane %v38, %v273
  %v275 = vlaneseq
  %v276 = vshrl.u32 %v275, 7
  %v277 = vsub.s32 7, %v276
  %v278 = vrot.slane %v40, %v277
  %v279 = vlaneseq
  %v280 = vshrl.u32 %v279, 7
  %v281 = vsub.s32 7, %v280
  %v282 = vrot.slane %v42, %v281
  %v283 = vlaneseq
  %v284 = vshrl.u32 %v283, 7
  %v285 = vsub.s32 7, %v284
  %v286 = vrot.slane %v44, %v285
  %v287 = vsub.f32 %v29, %v258
  %v288 = vsub.f32 %v30, %v258
  %v289 = vsub.f32 %v31, %v262
  %v290 = vsub.f32 %v32, %v262
  %v291 = vsub.f32 %v33, %v266
  %v292 = vsub.f32 %v34, %v266
  %v293 = vsub.f32 %v35, %v270
  %v294 = vsub.f32 %v36, %v270
  %v295 = vsub.f32 %v37, %v274
  %v296 = vsub.f32 %v38, %v274
  %v297 = vsub.f32 %v39, %v278
  %v298 = vsub.f32 %v40, %v278
  %v299 = vsub.f32 %v41, %v282
  %v300 = vsub.f32 %v42, %v282
  %v301 = vsub.f32 %v43, %v286
  %v302 = vsub.f32 %v44, %v286
  %v303 = vmul.f32 %v287, %v247
  %v304 = vmul.f32 %v288, %v247
  %v305 = vmul.f32 %v289, %v248
  %v306 = vmul.f32 %v290, %v248
  %v307 = vmul.f32 %v291, %v249
  %v308 = vmul.f32 %v292, %v249
  %v309 = vmul.f32 %v293, %v250
  %v310 = vmul.f32 %v294, %v250
  %v311 = vmul.f32 %v295, %v251
  %v312 = vmul.f32 %v296, %v251
  %v313 = vmul.f32 %v297, %v252
  %v314 = vmul.f32 %v298, %v252
  %v315 = vmul.f32 %v299, %v253
  %v316 = vmul.f32 %v300, %v253
  %v317 = vmul.f32 %v301, %v254
  %v318 = vmul.f32 %v302, %v254
  %v319 = vmul.f32 %v239, %v247
  %v320 = vmul.f32 %v240, %v248
  %v321 = vmul.f32 %v241, %v249
  %v322 = vmul.f32 %v242, %v250
  %v323 = vmul.f32 %v243, %v251
  %v324 = vmul.f32 %v244, %v252
  %v325 = vmul.f32 %v245, %v253
  %v326 = vmul.f32 %v246, %v254
  %v327 = vld [vmem:[%s1] sm:$0xff]
  %v328 = vld [vmem:[%s1 + $0x8] sm:$0xff]
  %v329 = vmul.f32 %v303, %v327
  %v330 = vmul.f32 %v304, %v328
  %v331 = vmul.f32 %v305, %v327
  %v332 = vmul.f32 %v306, %v328
  %v333 = vmul.f32 %v307, %v327
  %v334 = vmul.f32 %v308, %v328
  %v335 = vmul.f32 %v309, %v327
  %v336 = vmul.f32 %v310, %v328
  %v337 = vmul.f32 %v311, %v327
  %v338 = vmul.f32 %v312, %v328
  %v339 = vmul.f32 %v313, %v327
  %v340 = vmul.f32 %v314, %v328
  %v341 = vmul.f32 %v315, %v327
  %v342 = vmul.f32 %v316, %v328
  %v343 = vmul.f32 %v317, %v327
  %v344 = vmul.f32 %v318, %v328
  %s345 = scalar_lea.vmem %s1, 16
  %v346 = vld [vmem:[%s345] sm:$0xff]
  %v347 = vld [vmem:[%s345 + $0x8] sm:$0xff]
  %v348 = vadd.f32 %v329, %v346
  %v349 = vadd.f32 %v330, %v347
  %v350 = vadd.f32 %v331, %v346
  %v351 = vadd.f32 %v332, %v347
  %v352 = vadd.f32 %v333, %v346
  %v353 = vadd.f32 %v334, %v347
  %v354 = vadd.f32 %v335, %v346
  %v355 = vadd.f32 %v336, %v347
  %v356 = vadd.f32 %v337, %v346
  %v357 = vadd.f32 %v338, %v347
  %v358 = vadd.f32 %v339, %v346
  %v359 = vadd.f32 %v340, %v347
  %v360 = vadd.f32 %v341, %v346
  %v361 = vadd.f32 %v342, %v347
  %v362 = vadd.f32 %v343, %v346
  %v363 = vadd.f32 %v344, %v347
  %v364 = vld [vmem:[%s2] sm:$0xf]
  %v365 = vld [vmem:[%s3] sm:$0x1]
  %v367 = vlaneseq
  %v368 = vshrl.u32 %v367, 7
  %v369 = vsub.s32 0, %v368
  %v370 = vrot.slane %v365, %v369
  %v373 = vsel %vm45, %v348, 0
  %v376 = vsel %vm45, %v349, 0
  %v379 = vsel %vm45, %v350, 0
  %v382 = vsel %vm45, %v351, 0
  %v385 = vsel %vm45, %v352, 0
  %v388 = vsel %vm45, %v353, 0
  %v391 = vsel %vm45, %v354, 0
  %v394 = vsel %vm45, %v355, 0
  %v397 = vsel %vm45, %v356, 0
  %v400 = vsel %vm45, %v357, 0
  %v403 = vsel %vm45, %v358, 0
  %v406 = vsel %vm45, %v359, 0
  %v409 = vsel %vm45, %v360, 0
  %v412 = vsel %vm45, %v361, 0
  %v415 = vsel %vm45, %v362, 0
  %v418 = vsel %vm45, %v363, 0
  %vm420 = vcmask 1043456
  %v422 = vsel %vm420, %v364, 0
  %424 = vmatprep.subr.mxu0 0.0
  %425 = vmatpush1.msra.mxu0 0.0
  %426 = vmatprep.subr.mxu0 0.0
  %427 = vmatpush1.msra.mxu0 0.0
  %428 = vmatprep.subr.mxu0 0.0
  %429 = vmatpush1.msra.mxu0 0.0
  %430 = vmatprep.subr.mxu0 0.0
  %431 = vmatpush1.msra.mxu0 0.0
  %432 = vmatprep.subr.mxu0 0.0
  %433 = vmatpush1.msra.mxu0 0.0
  %434 = vmatprep.subr.mxu0 0.0
  %435 = vmatpush1.msra.mxu0 0.0
  %436 = vmatprep.subr.mxu0 0.0
  %437 = vmatpush1.msra.mxu0 0.0
  %438 = vmatprep.subr.mxu0 0.0
  %439 = vmatpush1.msra.mxu0 0.0
  %440 = vmatprep.subr.mxu0 0.0
  %441 = vmatpush1.msra.mxu0 0.0
  %442 = vmatprep.subr.mxu0 0.0
  %443 = vmatpush1.msra.mxu0 0.0
  %444 = vmatprep.subr.mxu0 0.0
  %445 = vmatpush1.msra.mxu0 0.0
  %446 = vmatprep.subr.mxu0 0.0
  %447 = vmatpush1.msra.mxu0 0.0
  %448 = vmatprep.subr.mxu0 0.0
  %449 = vmatpush1.msra.mxu0 0.0
  %450 = vmatprep.subr.mxu0 0.0
  %451 = vmatpush1.msra.mxu0 0.0
  %452 = vmatprep.subr.mxu0 0.0
  %453 = vmatpush1.msra.mxu0 0.0
  %454 = vmatprep.subr.mxu0 0.0
  %455 = vmatpush1.msra.mxu0 %v422
  %456 = vmatprep.subr.mxu0 0.0
  %457 = vmatpush2.msra.mxu0 0.0
  %458 = vmatprep.subr.mxu0 0.0
  %459 = vmatpush2.msra.mxu0 0.0
  %460 = vmatprep.subr.mxu0 0.0
  %461 = vmatpush2.msra.mxu0 0.0
  %462 = vmatprep.subr.mxu0 0.0
  %463 = vmatpush2.msra.mxu0 0.0
  %464 = vmatprep.subr.mxu0 0.0
  %465 = vmatpush2.msra.mxu0 0.0
  %466 = vmatprep.subr.mxu0 0.0
  %467 = vmatpush2.msra.mxu0 0.0
  %468 = vmatprep.subr.mxu0 0.0
  %469 = vmatpush2.msra.mxu0 0.0
  %470 = vmatprep.subr.mxu0 0.0
  %471 = vmatpush2.msra.mxu0 0.0
  %472 = vmatprep.subr.mxu0 0.0
  %473 = vmatpush2.msra.mxu0 0.0
  %474 = vmatprep.subr.mxu0 0.0
  %475 = vmatpush2.msra.mxu0 0.0
  %476 = vmatprep.subr.mxu0 0.0
  %477 = vmatpush2.msra.mxu0 0.0
  %478 = vmatprep.subr.mxu0 0.0
  %479 = vmatpush2.msra.mxu0 0.0
  %480 = vmatprep.subr.mxu0 0.0
  %481 = vmatpush2.msra.mxu0 0.0
  %482 = vmatprep.subr.mxu0 0.0
  %483 = vmatpush2.msra.mxu0 0.0
  %484 = vmatprep.subr.mxu0 0.0
  %485 = vmatpush2.msra.mxu0 0.0
  %486 = vmatprep.subr.mxu0 0.0
  %487 = vmatpush2.msra.mxu0 0.0
  %488 = vmatprep.mubr.f32.mxu0 0.0
  %489 = vmatmul.mubr.f32.gmra.mxu0 %v373
  %v490 = vpop.f32.mrf.mxu0
  %v491 = vadd.f32 %v370, %v490
  %v492 = vpop.f32.mrf.mxu0
  %493 = vmatprep.mubr.f32.mxu0 0.0
  %494 = vmatmul.mubr.f32.gmra.mxu0 %v376
  %v495 = vpop.f32.mrf.mxu0
  %v496 = vadd.f32 %v370, %v495
  %v497 = vpop.f32.mrf.mxu0
  %498 = vmatprep.mubr.f32.mxu0 0.0
  %499 = vmatmul.mubr.f32.gmra.mxu0 %v379
  %v500 = vpop.f32.mrf.mxu0
  %v501 = vadd.f32 %v370, %v500
  %v502 = vpop.f32.mrf.mxu0
  %503 = vmatprep.mubr.f32.mxu0 0.0
  %504 = vmatmul.mubr.f32.gmra.mxu0 %v382
  %v505 = vpop.f32.mrf.mxu0
  %v506 = vadd.f32 %v370, %v505
  %v507 = vpop.f32.mrf.mxu0
  %508 = vmatprep.mubr.f32.mxu0 0.0
  %509 = vmatmul.mubr.f32.gmra.mxu0 %v385
  %v510 = vpop.f32.mrf.mxu0
  %v511 = vadd.f32 %v370, %v510
  %v512 = vpop.f32.mrf.mxu0
  %513 = vmatprep.mubr.f32.mxu0 0.0
  %514 = vmatmul.mubr.f32.gmra.mxu0 %v388
  %v515 = vpop.f32.mrf.mxu0
  %v516 = vadd.f32 %v370, %v515
  %v517 = vpop.f32.mrf.mxu0
  %518 = vmatprep.mubr.f32.mxu0 0.0
  %519 = vmatmul.mubr.f32.gmra.mxu0 %v391
  %v520 = vpop.f32.mrf.mxu0
  %v521 = vadd.f32 %v370, %v520
  %v522 = vpop.f32.mrf.mxu0
  %523 = vmatprep.mubr.f32.mxu0 0.0
  %524 = vmatmul.mubr.f32.gmra.mxu0 %v394
  %v525 = vpop.f32.mrf.mxu0
  %v526 = vadd.f32 %v370, %v525
  %v527 = vpop.f32.mrf.mxu0
  %528 = vmatprep.mubr.f32.mxu0 0.0
  %529 = vmatmul.mubr.f32.gmra.mxu0 %v397
  %v530 = vpop.f32.mrf.mxu0
  %v531 = vadd.f32 %v370, %v530
  %v532 = vpop.f32.mrf.mxu0
  %533 = vmatprep.mubr.f32.mxu0 0.0
  %534 = vmatmul.mubr.f32.gmra.mxu0 %v400
  %v535 = vpop.f32.mrf.mxu0
  %v536 = vadd.f32 %v370, %v535
  %v537 = vpop.f32.mrf.mxu0
  %538 = vmatprep.mubr.f32.mxu0 0.0
  %539 = vmatmul.mubr.f32.gmra.mxu0 %v403
  %v540 = vpop.f32.mrf.mxu0
  %v541 = vadd.f32 %v370, %v540
  %v542 = vpop.f32.mrf.mxu0
  %543 = vmatprep.mubr.f32.mxu0 0.0
  %544 = vmatmul.mubr.f32.gmra.mxu0 %v406
  %v545 = vpop.f32.mrf.mxu0
  %v546 = vadd.f32 %v370, %v545
  %v547 = vpop.f32.mrf.mxu0
  %548 = vmatprep.mubr.f32.mxu0 0.0
  %549 = vmatmul.mubr.f32.gmra.mxu0 %v409
  %v550 = vpop.f32.mrf.mxu0
  %v551 = vadd.f32 %v370, %v550
  %v552 = vpop.f32.mrf.mxu0
  %553 = vmatprep.mubr.f32.mxu0 0.0
  %554 = vmatmul.mubr.f32.gmra.mxu0 %v412
  %v555 = vpop.f32.mrf.mxu0
  %v556 = vadd.f32 %v370, %v555
  %v557 = vpop.f32.mrf.mxu0
  %558 = vmatprep.mubr.f32.mxu0 0.0
  %559 = vmatmul.mubr.f32.gmra.mxu0 %v415
  %v560 = vpop.f32.mrf.mxu0
  %v561 = vadd.f32 %v370, %v560
  %v562 = vpop.f32.mrf.mxu0
  %563 = vmatprep.mubr.f32.mxu0 0.0
  %564 = vmatmul.mubr.f32.gmra.mxu0 %v418
  %v565 = vpop.f32.mrf.mxu0
  %v566 = vadd.f32 %v370, %v565
  %v567 = vpop.f32.mrf.mxu0
  %568 = vdwg.mxu0
  %v569 = vmax.f32 %v491, 0.0
  %v570 = vmax.f32 %v496, 0.0
  %v571 = vmax.f32 %v501, 0.0
  %v572 = vmax.f32 %v506, 0.0
  %v573 = vmax.f32 %v511, 0.0
  %v574 = vmax.f32 %v516, 0.0
  %v575 = vmax.f32 %v521, 0.0
  %v576 = vmax.f32 %v526, 0.0
  %v577 = vmax.f32 %v531, 0.0
  %v578 = vmax.f32 %v536, 0.0
  %v579 = vmax.f32 %v541, 0.0
  %v580 = vmax.f32 %v546, 0.0
  %v581 = vmax.f32 %v551, 0.0
  %v582 = vmax.f32 %v556, 0.0
  %v583 = vmax.f32 %v561, 0.0
  %v584 = vmax.f32 %v566, 0.0
  %v585 = vld [vmem:[%s4] sm:$0xf]
  %v586 = vld [vmem:[%s5] sm:$0x1]
  %v588 = vlaneseq
  %v589 = vshrl.u32 %v588, 7
  %v590 = vsub.s32 0, %v589
  %v591 = vrot.slane %v586, %v590
  %v594 = vsel %vm45, %v569, 0
  %v597 = vsel %vm45, %v570, 0
  %v600 = vsel %vm45, %v571, 0
  %v603 = vsel %vm45, %v572, 0
  %v606 = vsel %vm45, %v573, 0
  %v609 = vsel %vm45, %v574, 0
  %v612 = vsel %vm45, %v575, 0
  %v615 = vsel %vm45, %v576, 0
  %v618 = vsel %vm45, %v577, 0
  %v621 = vsel %vm45, %v578, 0
  %v624 = vsel %vm45, %v579, 0
  %v627 = vsel %vm45, %v580, 0
  %v630 = vsel %vm45, %v581, 0
  %v633 = vsel %vm45, %v582, 0
  %v636 = vsel %vm45, %v583, 0
  %v639 = vsel %vm45, %v584, 0
  %v642 = vsel %vm420, %v585, 0
  %644 = vmatprep.subr.mxu0 0.0
  %645 = vmatpush1.msra.mxu0 0.0
  %646 = vmatprep.subr.mxu0 0.0
  %647 = vmatpush1.msra.mxu0 0.0
  %648 = vmatprep.subr.mxu0 0.0
  %649 = vmatpush1.msra.mxu0 0.0
  %650 = vmatprep.subr.mxu0 0.0
  %651 = vmatpush1.msra.mxu0 0.0
  %652 = vmatprep.subr.mxu0 0.0
  %653 = vmatpush1.msra.mxu0 0.0
  %654 = vmatprep.subr.mxu0 0.0
  %655 = vmatpush1.msra.mxu0 0.0
  %656 = vmatprep.subr.mxu0 0.0
  %657 = vmatpush1.msra.mxu0 0.0
  %658 = vmatprep.subr.mxu0 0.0
  %659 = vmatpush1.msra.mxu0 0.0
  %660 = vmatprep.subr.mxu0 0.0
  %661 = vmatpush1.msra.mxu0 0.0
  %662 = vmatprep.subr.mxu0 0.0
  %663 = vmatpush1.msra.mxu0 0.0
  %664 = vmatprep.subr.mxu0 0.0
  %665 = vmatpush1.msra.mxu0 0.0
  %666 = vmatprep.subr.mxu0 0.0
  %667 = vmatpush1.msra.mxu0 0.0
  %668 = vmatprep.subr.mxu0 0.0
  %669 = vmatpush1.msra.mxu0 0.0
  %670 = vmatprep.subr.mxu0 0.0
  %671 = vmatpush1.msra.mxu0 0.0
  %672 = vmatprep.subr.mxu0 0.0
  %673 = vmatpush1.msra.mxu0 0.0
  %674 = vmatprep.subr.mxu0 0.0
  %675 = vmatpush1.msra.mxu0 %v642
  %676 = vmatprep.subr.mxu0 0.0
  %677 = vmatpush2.msra.mxu0 0.0
  %678 = vmatprep.subr.mxu0 0.0
  %679 = vmatpush2.msra.mxu0 0.0
  %680 = vmatprep.subr.mxu0 0.0
  %681 = vmatpush2.msra.mxu0 0.0
  %682 = vmatprep.subr.mxu0 0.0
  %683 = vmatpush2.msra.mxu0 0.0
  %684 = vmatprep.subr.mxu0 0.0
  %685 = vmatpush2.msra.mxu0 0.0
  %686 = vmatprep.subr.mxu0 0.0
  %687 = vmatpush2.msra.mxu0 0.0
  %688 = vmatprep.subr.mxu0 0.0
  %689 = vmatpush2.msra.mxu0 0.0
  %690 = vmatprep.subr.mxu0 0.0
  %691 = vmatpush2.msra.mxu0 0.0
  %692 = vmatprep.subr.mxu0 0.0
  %693 = vmatpush2.msra.mxu0 0.0
  %694 = vmatprep.subr.mxu0 0.0
  %695 = vmatpush2.msra.mxu0 0.0
  %696 = vmatprep.subr.mxu0 0.0
  %697 = vmatpush2.msra.mxu0 0.0
  %698 = vmatprep.subr.mxu0 0.0
  %699 = vmatpush2.msra.mxu0 0.0
  %700 = vmatprep.subr.mxu0 0.0
  %701 = vmatpush2.msra.mxu0 0.0
  %702 = vmatprep.subr.mxu0 0.0
  %703 = vmatpush2.msra.mxu0 0.0
  %704 = vmatprep.subr.mxu0 0.0
  %705 = vmatpush2.msra.mxu0 0.0
  %706 = vmatprep.subr.mxu0 0.0
  %707 = vmatpush2.msra.mxu0 0.0
  %708 = vmatprep.mubr.f32.mxu0 0.0
  %709 = vmatmul.mubr.f32.gmra.mxu0 %v594
  %v710 = vpop.f32.mrf.mxu0
  %v711 = vadd.f32 %v591, %v710
  %v712 = vpop.f32.mrf.mxu0
  %713 = vmatprep.mubr.f32.mxu0 0.0
  %714 = vmatmul.mubr.f32.gmra.mxu0 %v597
  %v715 = vpop.f32.mrf.mxu0
  %v716 = vadd.f32 %v591, %v715
  %v717 = vpop.f32.mrf.mxu0
  %718 = vmatprep.mubr.f32.mxu0 0.0
  %719 = vmatmul.mubr.f32.gmra.mxu0 %v600
  %v720 = vpop.f32.mrf.mxu0
  %v721 = vadd.f32 %v591, %v720
  %v722 = vpop.f32.mrf.mxu0
  %723 = vmatprep.mubr.f32.mxu0 0.0
  %724 = vmatmul.mubr.f32.gmra.mxu0 %v603
  %v725 = vpop.f32.mrf.mxu0
  %v726 = vadd.f32 %v591, %v725
  %v727 = vpop.f32.mrf.mxu0
  %728 = vmatprep.mubr.f32.mxu0 0.0
  %729 = vmatmul.mubr.f32.gmra.mxu0 %v606
  %v730 = vpop.f32.mrf.mxu0
  %v731 = vadd.f32 %v591, %v730
  %v732 = vpop.f32.mrf.mxu0
  %733 = vmatprep.mubr.f32.mxu0 0.0
  %734 = vmatmul.mubr.f32.gmra.mxu0 %v609
  %v735 = vpop.f32.mrf.mxu0
  %v736 = vadd.f32 %v591, %v735
  %v737 = vpop.f32.mrf.mxu0
  %738 = vmatprep.mubr.f32.mxu0 0.0
  %739 = vmatmul.mubr.f32.gmra.mxu0 %v612
  %v740 = vpop.f32.mrf.mxu0
  %v741 = vadd.f32 %v591, %v740
  %v742 = vpop.f32.mrf.mxu0
  %743 = vmatprep.mubr.f32.mxu0 0.0
  %744 = vmatmul.mubr.f32.gmra.mxu0 %v615
  %v745 = vpop.f32.mrf.mxu0
  %v746 = vadd.f32 %v591, %v745
  %v747 = vpop.f32.mrf.mxu0
  %748 = vmatprep.mubr.f32.mxu0 0.0
  %749 = vmatmul.mubr.f32.gmra.mxu0 %v618
  %v750 = vpop.f32.mrf.mxu0
  %v751 = vadd.f32 %v591, %v750
  %v752 = vpop.f32.mrf.mxu0
  %753 = vmatprep.mubr.f32.mxu0 0.0
  %754 = vmatmul.mubr.f32.gmra.mxu0 %v621
  %v755 = vpop.f32.mrf.mxu0
  %v756 = vadd.f32 %v591, %v755
  %v757 = vpop.f32.mrf.mxu0
  %758 = vmatprep.mubr.f32.mxu0 0.0
  %759 = vmatmul.mubr.f32.gmra.mxu0 %v624
  %v760 = vpop.f32.mrf.mxu0
  %v761 = vadd.f32 %v591, %v760
  %v762 = vpop.f32.mrf.mxu0
  %763 = vmatprep.mubr.f32.mxu0 0.0
  %764 = vmatmul.mubr.f32.gmra.mxu0 %v627
  %v765 = vpop.f32.mrf.mxu0
  %v766 = vadd.f32 %v591, %v765
  %v767 = vpop.f32.mrf.mxu0
  %768 = vmatprep.mubr.f32.mxu0 0.0
  %769 = vmatmul.mubr.f32.gmra.mxu0 %v630
  %v770 = vpop.f32.mrf.mxu0
  %v771 = vadd.f32 %v591, %v770
  %v772 = vpop.f32.mrf.mxu0
  %773 = vmatprep.mubr.f32.mxu0 0.0
  %774 = vmatmul.mubr.f32.gmra.mxu0 %v633
  %v775 = vpop.f32.mrf.mxu0
  %v776 = vadd.f32 %v591, %v775
  %v777 = vpop.f32.mrf.mxu0
  %778 = vmatprep.mubr.f32.mxu0 0.0
  %779 = vmatmul.mubr.f32.gmra.mxu0 %v636
  %v780 = vpop.f32.mrf.mxu0
  %v781 = vadd.f32 %v591, %v780
  %v782 = vpop.f32.mrf.mxu0
  %783 = vmatprep.mubr.f32.mxu0 0.0
  %784 = vmatmul.mubr.f32.gmra.mxu0 %v639
  %v785 = vpop.f32.mrf.mxu0
  %v786 = vadd.f32 %v591, %v785
  %v787 = vpop.f32.mrf.mxu0
  %788 = vdwg.mxu0
  %v789 = vadd.f32 %v711, %v303
  %v790 = vadd.f32 %v716, %v304
  %v791 = vadd.f32 %v721, %v305
  %v792 = vadd.f32 %v726, %v306
  %v793 = vadd.f32 %v731, %v307
  %v794 = vadd.f32 %v736, %v308
  %v795 = vadd.f32 %v741, %v309
  %v796 = vadd.f32 %v746, %v310
  %v797 = vadd.f32 %v751, %v311
  %v798 = vadd.f32 %v756, %v312
  %v799 = vadd.f32 %v761, %v313
  %v800 = vadd.f32 %v766, %v314
  %v801 = vadd.f32 %v771, %v315
  %v802 = vadd.f32 %v776, %v316
  %v803 = vadd.f32 %v781, %v317
  %v804 = vadd.f32 %v786, %v318
  %v805 = vld [vmem:[%s6] sm:$0xff]
  %v806 = vld [vmem:[%s7] sm:$0xff]
  %vm807 = vcmask 130048
  %v809 = vsel %vm807, %v805, 0
  %811 = vmatprep.subr.mxu0 0.0
  %812 = vmatpush1.msra.mxu0 0.0
  %813 = vmatprep.subr.mxu0 0.0
  %814 = vmatpush1.msra.mxu0 0.0
  %815 = vmatprep.subr.mxu0 0.0
  %816 = vmatpush1.msra.mxu0 0.0
  %817 = vmatprep.subr.mxu0 0.0
  %818 = vmatpush1.msra.mxu0 0.0
  %819 = vmatprep.subr.mxu0 0.0
  %820 = vmatpush1.msra.mxu0 0.0
  %821 = vmatprep.subr.mxu0 0.0
  %822 = vmatpush1.msra.mxu0 0.0
  %823 = vmatprep.subr.mxu0 0.0
  %824 = vmatpush1.msra.mxu0 0.0
  %825 = vmatprep.subr.mxu0 0.0
  %826 = vmatpush1.msra.mxu0 0.0
  %827 = vmatprep.subr.mxu0 0.0
  %828 = vmatpush1.msra.mxu0 0.0
  %829 = vmatprep.subr.mxu0 0.0
  %830 = vmatpush1.msra.mxu0 0.0
  %831 = vmatprep.subr.mxu0 0.0
  %832 = vmatpush1.msra.mxu0 0.0
  %833 = vmatprep.subr.mxu0 0.0
  %834 = vmatpush1.msra.mxu0 0.0
  %835 = vmatprep.subr.mxu0 0.0
  %836 = vmatpush1.msra.mxu0 0.0
  %837 = vmatprep.subr.mxu0 0.0
  %838 = vmatpush1.msra.mxu0 0.0
  %839 = vmatprep.subr.mxu0 0.0
  %840 = vmatpush1.msra.mxu0 %v790
  %841 = vmatprep.subr.mxu0 0.0
  %842 = vmatpush1.msra.mxu0 %v789
  %843 = vmatprep.subr.mxu0 0.0
  %844 = vmatpush2.msra.mxu0 0.0
  %845 = vmatprep.subr.mxu0 0.0
  %846 = vmatpush2.msra.mxu0 0.0
  %847 = vmatprep.subr.mxu0 0.0
  %848 = vmatpush2.msra.mxu0 0.0
  %849 = vmatprep.subr.mxu0 0.0
  %850 = vmatpush2.msra.mxu0 0.0
  %851 = vmatprep.subr.mxu0 0.0
  %852 = vmatpush2.msra.mxu0 0.0
  %853 = vmatprep.subr.mxu0 0.0
  %854 = vmatpush2.msra.mxu0 0.0
  %855 = vmatprep.subr.mxu0 0.0
  %856 = vmatpush2.msra.mxu0 0.0
  %857 = vmatprep.subr.mxu0 0.0
  %858 = vmatpush2.msra.mxu0 0.0
  %859 = vmatprep.subr.mxu0 0.0
  %860 = vmatpush2.msra.mxu0 0.0
  %861 = vmatprep.subr.mxu0 0.0
  %862 = vmatpush2.msra.mxu0 0.0
  %863 = vmatprep.subr.mxu0 0.0
  %864 = vmatpush2.msra.mxu0 0.0
  %865 = vmatprep.subr.mxu0 0.0
  %866 = vmatpush2.msra.mxu0 0.0
  %867 = vmatprep.subr.mxu0 0.0
  %868 = vmatpush2.msra.mxu0 0.0
  %869 = vmatprep.subr.mxu0 0.0
  %870 = vmatpush2.msra.mxu0 0.0
  %871 = vmatprep.subr.mxu0 0.0
  %872 = vmatpush2.msra.mxu0 0.0
  %873 = vmatprep.subr.mxu0 0.0
  %874 = vmatpush2.msra.mxu0 0.0
  %875 = vmatprep.mubr.f32.mxu0 0.0
  %876 = vmatmul.mubr.f32.gmra.mxu0 %v809
  %v877 = vpop.f32.mrf.mxu0
  %v878 = vadd.f32 %v806, %v877
  %v879 = vpop.f32.mrf.mxu0
  %880 = vdwg.mxu0
  %881 = vmatprep.subr.mxu0 0.0
  %882 = vmatpush1.msra.mxu0 0.0
  %883 = vmatprep.subr.mxu0 0.0
  %884 = vmatpush1.msra.mxu0 0.0
  %885 = vmatprep.subr.mxu0 0.0
  %886 = vmatpush1.msra.mxu0 0.0
  %887 = vmatprep.subr.mxu0 0.0
  %888 = vmatpush1.msra.mxu0 0.0
  %889 = vmatprep.subr.mxu0 0.0
  %890 = vmatpush1.msra.mxu0 0.0
  %891 = vmatprep.subr.mxu0 0.0
  %892 = vmatpush1.msra.mxu0 0.0
  %893 = vmatprep.subr.mxu0 0.0
  %894 = vmatpush1.msra.mxu0 0.0
  %895 = vmatprep.subr.mxu0 0.0
  %896 = vmatpush1.msra.mxu0 0.0
  %897 = vmatprep.subr.mxu0 0.0
  %898 = vmatpush1.msra.mxu0 0.0
  %899 = vmatprep.subr.mxu0 0.0
  %900 = vmatpush1.msra.mxu0 0.0
  %901 = vmatprep.subr.mxu0 0.0
  %902 = vmatpush1.msra.mxu0 0.0
  %903 = vmatprep.subr.mxu0 0.0
  %904 = vmatpush1.msra.mxu0 0.0
  %905 = vmatprep.subr.mxu0 0.0
  %906 = vmatpush1.msra.mxu0 0.0
  %907 = vmatprep.subr.mxu0 0.0
  %908 = vmatpush1.msra.mxu0 0.0
  %909 = vmatprep.subr.mxu0 0.0
  %910 = vmatpush1.msra.mxu0 %v792
  %911 = vmatprep.subr.mxu0 0.0
  %912 = vmatpush1.msra.mxu0 %v791
  %913 = vmatprep.subr.mxu0 0.0
  %914 = vmatpush2.msra.mxu0 0.0
  %915 = vmatprep.subr.mxu0 0.0
  %916 = vmatpush2.msra.mxu0 0.0
  %917 = vmatprep.subr.mxu0 0.0
  %918 = vmatpush2.msra.mxu0 0.0
  %919 = vmatprep.subr.mxu0 0.0
  %920 = vmatpush2.msra.mxu0 0.0
  %921 = vmatprep.subr.mxu0 0.0
  %922 = vmatpush2.msra.mxu0 0.0
  %923 = vmatprep.subr.mxu0 0.0
  %924 = vmatpush2.msra.mxu0 0.0
  %925 = vmatprep.subr.mxu0 0.0
  %926 = vmatpush2.msra.mxu0 0.0
  %927 = vmatprep.subr.mxu0 0.0
  %928 = vmatpush2.msra.mxu0 0.0
  %929 = vmatprep.subr.mxu0 0.0
  %930 = vmatpush2.msra.mxu0 0.0
  %931 = vmatprep.subr.mxu0 0.0
  %932 = vmatpush2.msra.mxu0 0.0
  %933 = vmatprep.subr.mxu0 0.0
  %934 = vmatpush2.msra.mxu0 0.0
  %935 = vmatprep.subr.mxu0 0.0
  %936 = vmatpush2.msra.mxu0 0.0
  %937 = vmatprep.subr.mxu0 0.0
  %938 = vmatpush2.msra.mxu0 0.0
  %939 = vmatprep.subr.mxu0 0.0
  %940 = vmatpush2.msra.mxu0 0.0
  %941 = vmatprep.subr.mxu0 0.0
  %942 = vmatpush2.msra.mxu0 0.0
  %943 = vmatprep.subr.mxu0 0.0
  %944 = vmatpush2.msra.mxu0 0.0
  %945 = vmatprep.mubr.f32.mxu0 0.0
  %946 = vmatmul.mubr.f32.gmra.mxu0 %v809
  %v947 = vpop.f32.mrf.mxu0
  %v948 = vadd.f32 %v806, %v947
  %v949 = vpop.f32.mrf.mxu0
  %950 = vdwg.mxu0
  %951 = vmatprep.subr.mxu0 0.0
  %952 = vmatpush1.msra.mxu0 0.0
  %953 = vmatprep.subr.mxu0 0.0
  %954 = vmatpush1.msra.mxu0 0.0
  %955 = vmatprep.subr.mxu0 0.0
  %956 = vmatpush1.msra.mxu0 0.0
  %957 = vmatprep.subr.mxu0 0.0
  %958 = vmatpush1.msra.mxu0 0.0
  %959 = vmatprep.subr.mxu0 0.0
  %960 = vmatpush1.msra.mxu0 0.0
  %961 = vmatprep.subr.mxu0 0.0
  %962 = vmatpush1.msra.mxu0 0.0
  %963 = vmatprep.subr.mxu0 0.0
  %964 = vmatpush1.msra.mxu0 0.0
  %965 = vmatprep.subr.mxu0 0.0
  %966 = vmatpush1.msra.mxu0 0.0
  %967 = vmatprep.subr.mxu0 0.0
  %968 = vmatpush1.msra.mxu0 0.0
  %969 = vmatprep.subr.mxu0 0.0
  %970 = vmatpush1.msra.mxu0 0.0
  %971 = vmatprep.subr.mxu0 0.0
  %972 = vmatpush1.msra.mxu0 0.0
  %973 = vmatprep.subr.mxu0 0.0
  %974 = vmatpush1.msra.mxu0 0.0
  %975 = vmatprep.subr.mxu0 0.0
  %976 = vmatpush1.msra.mxu0 0.0
  %977 = vmatprep.subr.mxu0 0.0
  %978 = vmatpush1.msra.mxu0 0.0
  %979 = vmatprep.subr.mxu0 0.0
  %980 = vmatpush1.msra.mxu0 %v794
  %981 = vmatprep.subr.mxu0 0.0
  %982 = vmatpush1.msra.mxu0 %v793
  %983 = vmatprep.subr.mxu0 0.0
  %984 = vmatpush2.msra.mxu0 0.0
  %985 = vmatprep.subr.mxu0 0.0
  %986 = vmatpush2.msra.mxu0 0.0
  %987 = vmatprep.subr.mxu0 0.0
  %988 = vmatpush2.msra.mxu0 0.0
  %989 = vmatprep.subr.mxu0 0.0
  %990 = vmatpush2.msra.mxu0 0.0
  %991 = vmatprep.subr.mxu0 0.0
  %992 = vmatpush2.msra.mxu0 0.0
  %993 = vmatprep.subr.mxu0 0.0
  %994 = vmatpush2.msra.mxu0 0.0
  %995 = vmatprep.subr.mxu0 0.0
  %996 = vmatpush2.msra.mxu0 0.0
  %997 = vmatprep.subr.mxu0 0.0
  %998 = vmatpush2.msra.mxu0 0.0
  %999 = vmatprep.subr.mxu0 0.0
  %1000 = vmatpush2.msra.mxu0 0.0
  %1001 = vmatprep.subr.mxu0 0.0
  %1002 = vmatpush2.msra.mxu0 0.0
  %1003 = vmatprep.subr.mxu0 0.0
  %1004 = vmatpush2.msra.mxu0 0.0
  %1005 = vmatprep.subr.mxu0 0.0
  %1006 = vmatpush2.msra.mxu0 0.0
  %1007 = vmatprep.subr.mxu0 0.0
  %1008 = vmatpush2.msra.mxu0 0.0
  %1009 = vmatprep.subr.mxu0 0.0
  %1010 = vmatpush2.msra.mxu0 0.0
  %1011 = vmatprep.subr.mxu0 0.0
  %1012 = vmatpush2.msra.mxu0 0.0
  %1013 = vmatprep.subr.mxu0 0.0
  %1014 = vmatpush2.msra.mxu0 0.0
  %1015 = vmatprep.mubr.f32.mxu0 0.0
  %1016 = vmatmul.mubr.f32.gmra.mxu0 %v809
  %v1017 = vpop.f32.mrf.mxu0
  %v1018 = vadd.f32 %v806, %v1017
  %v1019 = vpop.f32.mrf.mxu0
  %1020 = vdwg.mxu0
  %1021 = vmatprep.subr.mxu0 0.0
  %1022 = vmatpush1.msra.mxu0 0.0
  %1023 = vmatprep.subr.mxu0 0.0
  %1024 = vmatpush1.msra.mxu0 0.0
  %1025 = vmatprep.subr.mxu0 0.0
  %1026 = vmatpush1.msra.mxu0 0.0
  %1027 = vmatprep.subr.mxu0 0.0
  %1028 = vmatpush1.msra.mxu0 0.0
  %1029 = vmatprep.subr.mxu0 0.0
  %1030 = vmatpush1.msra.mxu0 0.0
  %1031 = vmatprep.subr.mxu0 0.0
  %1032 = vmatpush1.msra.mxu0 0.0
  %1033 = vmatprep.subr.mxu0 0.0
  %1034 = vmatpush1.msra.mxu0 0.0
  %1035 = vmatprep.subr.mxu0 0.0
  %1036 = vmatpush1.msra.mxu0 0.0
  %1037 = vmatprep.subr.mxu0 0.0
  %1038 = vmatpush1.msra.mxu0 0.0
  %1039 = vmatprep.subr.mxu0 0.0
  %1040 = vmatpush1.msra.mxu0 0.0
  %1041 = vmatprep.subr.mxu0 0.0
  %1042 = vmatpush1.msra.mxu0 0.0
  %1043 = vmatprep.subr.mxu0 0.0
  %1044 = vmatpush1.msra.mxu0 0.0
  %1045 = vmatprep.subr.mxu0 0.0
  %1046 = vmatpush1.msra.mxu0 0.0
  %1047 = vmatprep.subr.mxu0 0.0
  %1048 = vmatpush1.msra.mxu0 0.0
  %1049 = vmatprep.subr.mxu0 0.0
  %1050 = vmatpush1.msra.mxu0 %v796
  %1051 = vmatprep.subr.mxu0 0.0
  %1052 = vmatpush1.msra.mxu0 %v795
  %1053 = vmatprep.subr.mxu0 0.0
  %1054 = vmatpush2.msra.mxu0 0.0
  %1055 = vmatprep.subr.mxu0 0.0
  %1056 = vmatpush2.msra.mxu0 0.0
  %1057 = vmatprep.subr.mxu0 0.0
  %1058 = vmatpush2.msra.mxu0 0.0
  %1059 = vmatprep.subr.mxu0 0.0
  %1060 = vmatpush2.msra.mxu0 0.0
  %1061 = vmatprep.subr.mxu0 0.0
  %1062 = vmatpush2.msra.mxu0 0.0
  %1063 = vmatprep.subr.mxu0 0.0
  %1064 = vmatpush2.msra.mxu0 0.0
  %1065 = vmatprep.subr.mxu0 0.0
  %1066 = vmatpush2.msra.mxu0 0.0
  %1067 = vmatprep.subr.mxu0 0.0
  %1068 = vmatpush2.msra.mxu0 0.0
  %1069 = vmatprep.subr.mxu0 0.0
  %1070 = vmatpush2.msra.mxu0 0.0
  %1071 = vmatprep.subr.mxu0 0.0
  %1072 = vmatpush2.msra.mxu0 0.0
  %1073 = vmatprep.subr.mxu0 0.0
  %1074 = vmatpush2.msra.mxu0 0.0
  %1075 = vmatprep.subr.mxu0 0.0
  %1076 = vmatpush2.msra.mxu0 0.0
  %1077 = vmatprep.subr.mxu0 0.0
  %1078 = vmatpush2.msra.mxu0 0.0
  %1079 = vmatprep.subr.mxu0 0.0
  %1080 = vmatpush2.msra.mxu0 0.0
  %1081 = vmatprep.subr.mxu0 0.0
  %1082 = vmatpush2.msra.mxu0 0.0
  %1083 = vmatprep.subr.mxu0 0.0
  %1084 = vmatpush2.msra.mxu0 0.0
  %1085 = vmatprep.mubr.f32.mxu0 0.0
  %1086 = vmatmul.mubr.f32.gmra.mxu0 %v809
  %v1087 = vpop.f32.mrf.mxu0
  %v1088 = vadd.f32 %v806, %v1087
  %v1089 = vpop.f32.mrf.mxu0
  %1090 = vdwg.mxu0
  %1091 = vmatprep.subr.mxu0 0.0
  %1092 = vmatpush1.msra.mxu0 0.0
  %1093 = vmatprep.subr.mxu0 0.0
  %1094 = vmatpush1.msra.mxu0 0.0
  %1095 = vmatprep.subr.mxu0 0.0
  %1096 = vmatpush1.msra.mxu0 0.0
  %1097 = vmatprep.subr.mxu0 0.0
  %1098 = vmatpush1.msra.mxu0 0.0
  %1099 = vmatprep.subr.mxu0 0.0
  %1100 = vmatpush1.msra.mxu0 0.0
  %1101 = vmatprep.subr.mxu0 0.0
  %1102 = vmatpush1.msra.mxu0 0.0
  %1103 = vmatprep.subr.mxu0 0.0
  %1104 = vmatpush1.msra.mxu0 0.0
  %1105 = vmatprep.subr.mxu0 0.0
  %1106 = vmatpush1.msra.mxu0 0.0
  %1107 = vmatprep.subr.mxu0 0.0
  %1108 = vmatpush1.msra.mxu0 0.0
  %1109 = vmatprep.subr.mxu0 0.0
  %1110 = vmatpush1.msra.mxu0 0.0
  %1111 = vmatprep.subr.mxu0 0.0
  %1112 = vmatpush1.msra.mxu0 0.0
  %1113 = vmatprep.subr.mxu0 0.0
  %1114 = vmatpush1.msra.mxu0 0.0
  %1115 = vmatprep.subr.mxu0 0.0
  %1116 = vmatpush1.msra.mxu0 0.0
  %1117 = vmatprep.subr.mxu0 0.0
  %1118 = vmatpush1.msra.mxu0 0.0
  %1119 = vmatprep.subr.mxu0 0.0
  %1120 = vmatpush1.msra.mxu0 %v798
  %1121 = vmatprep.subr.mxu0 0.0
  %1122 = vmatpush1.msra.mxu0 %v797
  %1123 = vmatprep.subr.mxu0 0.0
  %1124 = vmatpush2.msra.mxu0 0.0
  %1125 = vmatprep.subr.mxu0 0.0
  %1126 = vmatpush2.msra.mxu0 0.0
  %1127 = vmatprep.subr.mxu0 0.0
  %1128 = vmatpush2.msra.mxu0 0.0
  %1129 = vmatprep.subr.mxu0 0.0
  %1130 = vmatpush2.msra.mxu0 0.0
  %1131 = vmatprep.subr.mxu0 0.0
  %1132 = vmatpush2.msra.mxu0 0.0
  %1133 = vmatprep.subr.mxu0 0.0
  %1134 = vmatpush2.msra.mxu0 0.0
  %1135 = vmatprep.subr.mxu0 0.0
  %1136 = vmatpush2.msra.mxu0 0.0
  %1137 = vmatprep.subr.mxu0 0.0
  %1138 = vmatpush2.msra.mxu0 0.0
  %1139 = vmatprep.subr.mxu0 0.0
  %1140 = vmatpush2.msra.mxu0 0.0
  %1141 = vmatprep.subr.mxu0 0.0
  %1142 = vmatpush2.msra.mxu0 0.0
  %1143 = vmatprep.subr.mxu0 0.0
  %1144 = vmatpush2.msra.mxu0 0.0
  %1145 = vmatprep.subr.mxu0 0.0
  %1146 = vmatpush2.msra.mxu0 0.0
  %1147 = vmatprep.subr.mxu0 0.0
  %1148 = vmatpush2.msra.mxu0 0.0
  %1149 = vmatprep.subr.mxu0 0.0
  %1150 = vmatpush2.msra.mxu0 0.0
  %1151 = vmatprep.subr.mxu0 0.0
  %1152 = vmatpush2.msra.mxu0 0.0
  %1153 = vmatprep.subr.mxu0 0.0
  %1154 = vmatpush2.msra.mxu0 0.0
  %1155 = vmatprep.mubr.f32.mxu0 0.0
  %1156 = vmatmul.mubr.f32.gmra.mxu0 %v809
  %v1157 = vpop.f32.mrf.mxu0
  %v1158 = vadd.f32 %v806, %v1157
  %v1159 = vpop.f32.mrf.mxu0
  %1160 = vdwg.mxu0
  %1161 = vmatprep.subr.mxu0 0.0
  %1162 = vmatpush1.msra.mxu0 0.0
  %1163 = vmatprep.subr.mxu0 0.0
  %1164 = vmatpush1.msra.mxu0 0.0
  %1165 = vmatprep.subr.mxu0 0.0
  %1166 = vmatpush1.msra.mxu0 0.0
  %1167 = vmatprep.subr.mxu0 0.0
  %1168 = vmatpush1.msra.mxu0 0.0
  %1169 = vmatprep.subr.mxu0 0.0
  %1170 = vmatpush1.msra.mxu0 0.0
  %1171 = vmatprep.subr.mxu0 0.0
  %1172 = vmatpush1.msra.mxu0 0.0
  %1173 = vmatprep.subr.mxu0 0.0
  %1174 = vmatpush1.msra.mxu0 0.0
  %1175 = vmatprep.subr.mxu0 0.0
  %1176 = vmatpush1.msra.mxu0 0.0
  %1177 = vmatprep.subr.mxu0 0.0
  %1178 = vmatpush1.msra.mxu0 0.0
  %1179 = vmatprep.subr.mxu0 0.0
  %1180 = vmatpush1.msra.mxu0 0.0
  %1181 = vmatprep.subr.mxu0 0.0
  %1182 = vmatpush1.msra.mxu0 0.0
  %1183 = vmatprep.subr.mxu0 0.0
  %1184 = vmatpush1.msra.mxu0 0.0
  %1185 = vmatprep.subr.mxu0 0.0
  %1186 = vmatpush1.msra.mxu0 0.0
  %1187 = vmatprep.subr.mxu0 0.0
  %1188 = vmatpush1.msra.mxu0 0.0
  %1189 = vmatprep.subr.mxu0 0.0
  %1190 = vmatpush1.msra.mxu0 %v800
  %1191 = vmatprep.subr.mxu0 0.0
  %1192 = vmatpush1.msra.mxu0 %v799
  %1193 = vmatprep.subr.mxu0 0.0
  %1194 = vmatpush2.msra.mxu0 0.0
  %1195 = vmatprep.subr.mxu0 0.0
  %1196 = vmatpush2.msra.mxu0 0.0
  %1197 = vmatprep.subr.mxu0 0.0
  %1198 = vmatpush2.msra.mxu0 0.0
  %1199 = vmatprep.subr.mxu0 0.0
  %1200 = vmatpush2.msra.mxu0 0.0
  %1201 = vmatprep.subr.mxu0 0.0
  %1202 = vmatpush2.msra.mxu0 0.0
  %1203 = vmatprep.subr.mxu0 0.0
  %1204 = vmatpush2.msra.mxu0 0.0
  %1205 = vmatprep.subr.mxu0 0.0
  %1206 = vmatpush2.msra.mxu0 0.0
  %1207 = vmatprep.subr.mxu0 0.0
  %1208 = vmatpush2.msra.mxu0 0.0
  %1209 = vmatprep.subr.mxu0 0.0
  %1210 = vmatpush2.msra.mxu0 0.0
  %1211 = vmatprep.subr.mxu0 0.0
  %1212 = vmatpush2.msra.mxu0 0.0
  %1213 = vmatprep.subr.mxu0 0.0
  %1214 = vmatpush2.msra.mxu0 0.0
  %1215 = vmatprep.subr.mxu0 0.0
  %1216 = vmatpush2.msra.mxu0 0.0
  %1217 = vmatprep.subr.mxu0 0.0
  %1218 = vmatpush2.msra.mxu0 0.0
  %1219 = vmatprep.subr.mxu0 0.0
  %1220 = vmatpush2.msra.mxu0 0.0
  %1221 = vmatprep.subr.mxu0 0.0
  %1222 = vmatpush2.msra.mxu0 0.0
  %1223 = vmatprep.subr.mxu0 0.0
  %1224 = vmatpush2.msra.mxu0 0.0
  %1225 = vmatprep.mubr.f32.mxu0 0.0
  %1226 = vmatmul.mubr.f32.gmra.mxu0 %v809
  %v1227 = vpop.f32.mrf.mxu0
  %v1228 = vadd.f32 %v806, %v1227
  %v1229 = vpop.f32.mrf.mxu0
  %1230 = vdwg.mxu0
  %1231 = vmatprep.subr.mxu0 0.0
  %1232 = vmatpush1.msra.mxu0 0.0
  %1233 = vmatprep.subr.mxu0 0.0
  %1234 = vmatpush1.msra.mxu0 0.0
  %1235 = vmatprep.subr.mxu0 0.0
  %1236 = vmatpush1.msra.mxu0 0.0
  %1237 = vmatprep.subr.mxu0 0.0
  %1238 = vmatpush1.msra.mxu0 0.0
  %1239 = vmatprep.subr.mxu0 0.0
  %1240 = vmatpush1.msra.mxu0 0.0
  %1241 = vmatprep.subr.mxu0 0.0
  %1242 = vmatpush1.msra.mxu0 0.0
  %1243 = vmatprep.subr.mxu0 0.0
  %1244 = vmatpush1.msra.mxu0 0.0
  %1245 = vmatprep.subr.mxu0 0.0
  %1246 = vmatpush1.msra.mxu0 0.0
  %1247 = vmatprep.subr.mxu0 0.0
  %1248 = vmatpush1.msra.mxu0 0.0
  %1249 = vmatprep.subr.mxu0 0.0
  %1250 = vmatpush1.msra.mxu0 0.0
  %1251 = vmatprep.subr.mxu0 0.0
  %1252 = vmatpush1.msra.mxu0 0.0
  %1253 = vmatprep.subr.mxu0 0.0
  %1254 = vmatpush1.msra.mxu0 0.0
  %1255 = vmatprep.subr.mxu0 0.0
  %1256 = vmatpush1.msra.mxu0 0.0
  %1257 = vmatprep.subr.mxu0 0.0
  %1258 = vmatpush1.msra.mxu0 0.0
  %1259 = vmatprep.subr.mxu0 0.0
  %1260 = vmatpush1.msra.mxu0 %v802
  %1261 = vmatprep.subr.mxu0 0.0
  %1262 = vmatpush1.msra.mxu0 %v801
  %1263 = vmatprep.subr.mxu0 0.0
  %1264 = vmatpush2.msra.mxu0 0.0
  %1265 = vmatprep.subr.mxu0 0.0
  %1266 = vmatpush2.msra.mxu0 0.0
  %1267 = vmatprep.subr.mxu0 0.0
  %1268 = vmatpush2.msra.mxu0 0.0
  %1269 = vmatprep.subr.mxu0 0.0
  %1270 = vmatpush2.msra.mxu0 0.0
  %1271 = vmatprep.subr.mxu0 0.0
  %1272 = vmatpush2.msra.mxu0 0.0
  %1273 = vmatprep.subr.mxu0 0.0
  %1274 = vmatpush2.msra.mxu0 0.0
  %1275 = vmatprep.subr.mxu0 0.0
  %1276 = vmatpush2.msra.mxu0 0.0
  %1277 = vmatprep.subr.mxu0 0.0
  %1278 = vmatpush2.msra.mxu0 0.0
  %1279 = vmatprep.subr.mxu0 0.0
  %1280 = vmatpush2.msra.mxu0 0.0
  %1281 = vmatprep.subr.mxu0 0.0
  %1282 = vmatpush2.msra.mxu0 0.0
  %1283 = vmatprep.subr.mxu0 0.0
  %1284 = vmatpush2.msra.mxu0 0.0
  %1285 = vmatprep.subr.mxu0 0.0
  %1286 = vmatpush2.msra.mxu0 0.0
  %1287 = vmatprep.subr.mxu0 0.0
  %1288 = vmatpush2.msra.mxu0 0.0
  %1289 = vmatprep.subr.mxu0 0.0
  %1290 = vmatpush2.msra.mxu0 0.0
  %1291 = vmatprep.subr.mxu0 0.0
  %1292 = vmatpush2.msra.mxu0 0.0
  %1293 = vmatprep.subr.mxu0 0.0
  %1294 = vmatpush2.msra.mxu0 0.0
  %1295 = vmatprep.mubr.f32.mxu0 0.0
  %1296 = vmatmul.mubr.f32.gmra.mxu0 %v809
  %v1297 = vpop.f32.mrf.mxu0
  %v1298 = vadd.f32 %v806, %v1297
  %v1299 = vpop.f32.mrf.mxu0
  %1300 = vdwg.mxu0
  %1301 = vmatprep.subr.mxu0 0.0
  %1302 = vmatpush1.msra.mxu0 0.0
  %1303 = vmatprep.subr.mxu0 0.0
  %1304 = vmatpush1.msra.mxu0 0.0
  %1305 = vmatprep.subr.mxu0 0.0
  %1306 = vmatpush1.msra.mxu0 0.0
  %1307 = vmatprep.subr.mxu0 0.0
  %1308 = vmatpush1.msra.mxu0 0.0
  %1309 = vmatprep.subr.mxu0 0.0
  %1310 = vmatpush1.msra.mxu0 0.0
  %1311 = vmatprep.subr.mxu0 0.0
  %1312 = vmatpush1.msra.mxu0 0.0
  %1313 = vmatprep.subr.mxu0 0.0
  %1314 = vmatpush1.msra.mxu0 0.0
  %1315 = vmatprep.subr.mxu0 0.0
  %1316 = vmatpush1.msra.mxu0 0.0
  %1317 = vmatprep.subr.mxu0 0.0
  %1318 = vmatpush1.msra.mxu0 0.0
  %1319 = vmatprep.subr.mxu0 0.0
  %1320 = vmatpush1.msra.mxu0 0.0
  %1321 = vmatprep.subr.mxu0 0.0
  %1322 = vmatpush1.msra.mxu0 0.0
  %1323 = vmatprep.subr.mxu0 0.0
  %1324 = vmatpush1.msra.mxu0 0.0
  %1325 = vmatprep.subr.mxu0 0.0
  %1326 = vmatpush1.msra.mxu0 0.0
  %1327 = vmatprep.subr.mxu0 0.0
  %1328 = vmatpush1.msra.mxu0 0.0
  %1329 = vmatprep.subr.mxu0 0.0
  %1330 = vmatpush1.msra.mxu0 %v804
  %1331 = vmatprep.subr.mxu0 0.0
  %1332 = vmatpush1.msra.mxu0 %v803
  %1333 = vmatprep.subr.mxu0 0.0
  %1334 = vmatpush2.msra.mxu0 0.0
  %1335 = vmatprep.subr.mxu0 0.0
  %1336 = vmatpush2.msra.mxu0 0.0
  %1337 = vmatprep.subr.mxu0 0.0
  %1338 = vmatpush2.msra.mxu0 0.0
  %1339 = vmatprep.subr.mxu0 0.0
  %1340 = vmatpush2.msra.mxu0 0.0
  %1341 = vmatprep.subr.mxu0 0.0
  %1342 = vmatpush2.msra.mxu0 0.0
  %1343 = vmatprep.subr.mxu0 0.0
  %1344 = vmatpush2.msra.mxu0 0.0
  %1345 = vmatprep.subr.mxu0 0.0
  %1346 = vmatpush2.msra.mxu0 0.0
  %1347 = vmatprep.subr.mxu0 0.0
  %1348 = vmatpush2.msra.mxu0 0.0
  %1349 = vmatprep.subr.mxu0 0.0
  %1350 = vmatpush2.msra.mxu0 0.0
  %1351 = vmatprep.subr.mxu0 0.0
  %1352 = vmatpush2.msra.mxu0 0.0
  %1353 = vmatprep.subr.mxu0 0.0
  %1354 = vmatpush2.msra.mxu0 0.0
  %1355 = vmatprep.subr.mxu0 0.0
  %1356 = vmatpush2.msra.mxu0 0.0
  %1357 = vmatprep.subr.mxu0 0.0
  %1358 = vmatpush2.msra.mxu0 0.0
  %1359 = vmatprep.subr.mxu0 0.0
  %1360 = vmatpush2.msra.mxu0 0.0
  %1361 = vmatprep.subr.mxu0 0.0
  %1362 = vmatpush2.msra.mxu0 0.0
  %1363 = vmatprep.subr.mxu0 0.0
  %1364 = vmatpush2.msra.mxu0 0.0
  %1365 = vmatprep.mubr.f32.mxu0 0.0
  %1366 = vmatmul.mubr.f32.gmra.mxu0 %v809
  %v1367 = vpop.f32.mrf.mxu0
  %v1368 = vadd.f32 %v806, %v1367
  %v1369 = vpop.f32.mrf.mxu0
  %1370 = vdwg.mxu0
  %v1371 = vmul.f32 %v878, %v319
  %v1372 = vmul.f32 %v948, %v320
  %v1373 = vmul.f32 %v1018, %v321
  %v1374 = vmul.f32 %v1088, %v322
  %v1375 = vmul.f32 %v1158, %v323
  %v1376 = vmul.f32 %v1228, %v324
  %v1377 = vmul.f32 %v1298, %v325
  %v1378 = vmul.f32 %v1368, %v326
  %v1379 = vadd.f32 %v1371, %v258
  %v1380 = vadd.f32 %v1372, %v262
  %v1381 = vadd.f32 %v1373, %v266
  %v1382 = vadd.f32 %v1374, %v270
  %v1383 = vadd.f32 %v1375, %v274
  %v1384 = vadd.f32 %v1376, %v278
  %v1385 = vadd.f32 %v1377, %v282
  %v1386 = vadd.f32 %v1378, %v286
  %1387 = vst.msk [vmem:[%s8] sm:$0xff] %vm45, %v1379
  %1388 = vst.msk [vmem:[%s8 + $0x8] sm:$0xff] %vm45, %v1380
  %1389 = vst.msk [vmem:[%s8 + $0x10] sm:$0xff] %vm45, %v1381
  %1390 = vst.msk [vmem:[%s8 + $0x18] sm:$0xff] %vm45, %v1382
  %1391 = vst.msk [vmem:[%s8 + $0x20] sm:$0xff] %vm45, %v1383
  %1392 = vst.msk [vmem:[%s8 + $0x28] sm:$0xff] %vm45, %v1384
  %1393 = vst.msk [vmem:[%s8 + $0x30] sm:$0xff] %vm45, %v1385
  %1394 = vst.msk [vmem:[%s8 + $0x38] sm:$0xff] %vm45, %v1386
  // Predicated region
  $region34: #{ts_mixer_forward.3} parent=0 // pred_check
    _
  $region35: #{ts_mixer_forward.3} parent=0 // pred_check_branch
    %1396 = sbr.rel (0) target = $region37
  $region36: #{ts_mixer_forward.3} parent=0 // pred_region
    _
  $region37: #{ts_mixer_forward.3} parent=0 // pred_fallthru
    _
  // Predicated region
  $region38: #{ts_mixer_forward.3} parent=0 // pred_check
    _
  $region39: #{ts_mixer_forward.3} parent=0 // pred_check_branch
    %1398 = sbr.rel (0) target = $region41
  $region40: #{ts_mixer_forward.3} parent=0 // pred_region
    _
  $region41: #{ts_mixer_forward.3} parent=0 // pred_fallthru
    _

</llo_original>
